<compile_context>
chip_gen: v5e
topology: v5e:2x2
jax: 0.10.0
libtpu: 0.0.40
codegen_flags: <defaults>
</compile_context>

<pallas_src>
import functools

import numpy as np

import jax
import jax.numpy as jnp
from jax import lax
from jax.experimental import pallas as pl
from jax.experimental.pallas import tpu as pltpu


# Row layout of the packed per-channel vector bundle (see lgvit_block()).
_ROW_LEPE = 0            # rows 0..8: depthwise 3x3 taps, width C
_ROW_N1G, _ROW_N1B = 9, 10
_ROW_N2G, _ROW_N2B = 11, 12
_ROW_B1 = 13             # [k_bias(perm) | up_bias]      width C + C4
_ROW_DNB = 14
_ROW_B2 = 15             # [act_bias | q_bias(perm)]     width 2C
_ROW_OUTB = 16
_ROW_FC1B = 17           # width HID
_ROW_FC2B = 18
_ROW_LEPEB = 19
_NUM_ROWS = 20


# ------------------------- in-kernel math helpers (Pallas) --------------------

def _silu_k(x):
    # SiLU with sigmoid(x) = 0.5*(tanh(x/2)+1): one EUP transcendental per
    # element (review: halves SiLU's EUP traffic vs exp + reciprocal).
    return x * (0.5 * jnp.tanh(0.5 * x) + 0.5)


def _elu_p1_k(x):
    # ELU(alpha=1) + 1  ==  x + 1 (x > 0) / exp(x) (x <= 0)
    return jnp.where(x > 0.0, x + 1.0, jnp.exp(jnp.minimum(x, 0.0)))


def _gelu_tanh_k(x):
    # tanh-approx GELU (single EUP transcendental); |err| vs exact GELU < 1e-3.
    c = 0.7978845608028654
    return 0.5 * x * (1.0 + jnp.tanh(c * (x + 0.044715 * x * x * x)))


def _layernorm(x, g, b):
    mu = jnp.mean(x, axis=-1, keepdims=True)
    var = jnp.mean((x - mu) ** 2, axis=-1, keepdims=True)
    return (x - mu) * lax.rsqrt(var + 1e-5) * g + b


# ---------------------- phase 1: k/v + cross-token reductions -----------------

def _lgvit_p1_kernel(x_ref, w1_ref, dnw_ref, mbd_ref, vecs_ref, cos_ref, sin_ref,
                     kv_ref, kmean_ref, v_ref, kv_acc, ks_acc, *, inv_n):
    bf16 = jnp.bfloat16
    t = pl.program_id(1)

    x = x_ref[...]                                   # (tn, C) f32
    tn, C = x.shape
    C4 = dnw_ref.shape[0]
    half = C // 2

    n1g = vecs_ref[_ROW_N1G:_ROW_N1G + 1, :C]
    n1b = vecs_ref[_ROW_N1B:_ROW_N1B + 1, :C]
    b1 = vecs_ref[_ROW_B1:_ROW_B1 + 1, :C + C4]
    dnb = vecs_ref[_ROW_DNB:_ROW_DNB + 1, :C]

    xn = _layernorm(x, n1g, n1b)

    # fused [k | up_proj] projection (bf16 operands, f32 accumulation)
    y = jnp.dot(xn.astype(bf16), w1_ref[...],
                preferred_element_type=jnp.float32) + b1
    k = _elu_p1_k(y[:, :C])                          # (tn, C), de-interleaved
    v = jnp.dot(_silu_k(y[:, C:]).astype(bf16), dnw_ref[...],
                preferred_element_type=jnp.float32) + dnb

    # RoPE in the de-interleaved channel layout: one lane roll per tensor
    k_rope = k * cos_ref[...] + jnp.roll(k, half, axis=1) * sin_ref[...]

    v_ref[...] = v.astype(bf16)                      # stash v for phase 2 (LePE)

    @pl.when(t == 0)
    def _():
        kv_acc[...] = jnp.zeros_like(kv_acc)
        ks_acc[...] = jnp.zeros_like(ks_acc)

    # kv += k_rope^T @ v without a materialized transpose (contract token dim 0)
    kv_acc[...] += lax.dot_general(
        k_rope.astype(bf16), v.astype(bf16),
        dimension_numbers=(((0,), (0,)), ((), ())),
        preferred_element_type=jnp.float32)
    ks_acc[...] += jnp.sum(k, axis=0, keepdims=True)

    @pl.when(t == pl.num_programs(1) - 1)
    def _():
        # Fold 1/N and the block-diagonal same-head mask here (once per batch)
        # and ship kv to phase 2 already in bf16; keep k_mean in f32.
        kv_ref[...] = (kv_acc[...] * inv_n * mbd_ref[...]).astype(bf16)
        kmean_ref[...] = ks_acc[...] * inv_n


# ---------- phase 2: q-side attention, LePE, gate/out-proj, chunked MLP -------

def _lgvit_p2_kernel(x_ref, vpad_hbm, kv_ref, kmean_ref, w2_ref, outw_ref,
                     fc1w_ref, fc2w_ref, mbd_ref, vecs_ref, cos_ref, sin_ref,
                     lmask_ref, o_ref, vhalo, dma_sem, *, W, pad, hid_chunk):
    bf16 = jnp.bfloat16
    dot = functools.partial(jnp.dot, preferred_element_type=jnp.float32)

    b = pl.program_id(0)
    t = pl.program_id(1)

    x = x_ref[...]                                   # (tn, C) f32
    tn, C = x.shape
    HID = fc1w_ref.shape[1]
    half = C // 2

    # Kick off the LePE halo DMA early so it overlaps the matmuls below.
    row0 = pl.multiple_of(t * tn, tn)
    halo_cp = pltpu.make_async_copy(
        vpad_hbm.at[b, pl.ds(row0, tn + 2 * pad), :], vhalo, dma_sem)
    halo_cp.start()

    n1g = vecs_ref[_ROW_N1G:_ROW_N1G + 1, :C]
    n1b = vecs_ref[_ROW_N1B:_ROW_N1B + 1, :C]
    n2g = vecs_ref[_ROW_N2G:_ROW_N2G + 1, :C]
    n2b = vecs_ref[_ROW_N2B:_ROW_N2B + 1, :C]
    b2 = vecs_ref[_ROW_B2:_ROW_B2 + 1, :2 * C]
    outb = vecs_ref[_ROW_OUTB:_ROW_OUTB + 1, :C]
    fc2b = vecs_ref[_ROW_FC2B:_ROW_FC2B + 1, :C]
    lepeb = vecs_ref[_ROW_LEPEB:_ROW_LEPEB + 1, :C]

    shortcut = x
    xn = _layernorm(x, n1g, n1b)

    # fused [act_proj | q] projection
    y = dot(xn.astype(bf16), w2_ref[...]) + b2       # (tn, 2C)
    act_res = _silu_k(y[:, :C])
    q = _elu_p1_k(y[:, C:])                          # de-interleaved q

    q_rope = q * cos_ref[...] + jnp.roll(q, half, axis=1) * sin_ref[...]

    # linear attention: kv / k_mean come pre-reduced (and kv pre-masked) from
    # phase 1; exact reciprocal for the denominator (precision concern).
    denom = dot((q * kmean_ref[...]).astype(bf16), mbd_ref[...]) + 1e-6
    attn = dot(q_rope.astype(bf16), kv_ref[...]) * (1.0 / denom)

    # LePE: 3x3 depthwise conv read as static slices of the zero-padded halo
    # scratch (no token-axis rolls -> XLU stays free for LN/rope work).
    halo_cp.wait()
    lw = vecs_ref[_ROW_LEPE:_ROW_LEPE + 9, :C]       # (9, C) taps
    lmask = lmask_ref[...]                           # (tn, 9) validity (bf16)
    lepe = jnp.zeros((tn, C), jnp.float32)
    tap = 0
    for dy in (-1, 0, 1):
        for dx in (-1, 0, 1):
            shift = dy * W + dx
            src = vhalo[pad + shift:pad + shift + tn, :]
            w_tap = lw[tap:tap + 1, :]
            if dx != 0:
                # column wrap-around needs masking; pure-vertical taps read the
                # explicit zero halo rows and need no mask at all.
                w_tap = lmask[:, tap:tap + 1] * w_tap
            lepe = lepe + src * w_tap
            tap += 1
    lepe = lepe + lepeb

    # gate, out projection, residual
    gated = ((attn + lepe) * act_res).astype(bf16)
    x1 = shortcut + dot(gated, outw_ref[...]) + outb

    # MLP, HID-chunked: never materializes the full (tn, HID) hidden tensor.
    xn2 = _layernorm(x1, n2g, n2b).astype(bf16)
    acc = x1 + fc2b
    for c0 in range(0, HID, hid_chunk):
        c1 = c0 + hid_chunk
        h = _gelu_tanh_k(dot(xn2, fc1w_ref[:, c0:c1])
                         + vecs_ref[_ROW_FC1B:_ROW_FC1B + 1, c0:c1])
        acc = acc + dot(h.astype(bf16), fc2w_ref[c0:c1, :])
    o_ref[...] = acc


# --------------------------------- the wrapper ---------------------------------

def lgvit_block(x, params, cos_half, sin_half, *, H, W, num_heads,
                token_tile=None, hid_chunk=512,
                vmem_limit_bytes=48 * 1024 * 1024):
    B, N, C = x.shape
    assert N == H * W, "input feature has wrong size"
    C4 = params["upW"].shape[1]
    HID = params["fc1W"].shape[1]
    hd = C // num_heads
    bf16 = jnp.bfloat16

    if token_tile is None:
        token_tile = N
        for cand in (2048, 1024, 512, 256, 128, 64, 32, 16, 8):
            if N % cand == 0:
                token_tile = cand
                break
    tn = token_tile
    assert N % tn == 0, "token_tile must divide N"
    T = N // tn

    hk = hid_chunk if (hid_chunk and HID % hid_chunk == 0) else HID
    hk = min(hk, HID)

    PAD = W + 1                                      # LePE halo: +-W rows, +-1 col

    # de-interleave permutation for q/k channels (makes RoPE a single lane roll)
    perm = np.concatenate([np.arange(0, C, 2), np.arange(1, C, 2)])
    qW_p = params["qkW"][:, :C][:, perm]
    kW_p = params["qkW"][:, C:][:, perm]
    qb_p = params["qkb"][:, :C][:, perm]
    kb_p = params["qkb"][:, C:][:, perm]

    # phase-1 fused [k | up_proj] and phase-2 fused [act_proj | q] weights (bf16)
    w1 = jnp.concatenate([kW_p, params["upW"]], axis=1).astype(bf16)
    w2 = jnp.concatenate([params["actW"], qW_p], axis=1).astype(bf16)
    b1 = jnp.concatenate([kb_p, params["upb"]], axis=1)
    b2 = jnp.concatenate([params["actb"], qb_p], axis=1)

    dnW = params["dnW"].astype(bf16)
    outW = params["outW"].astype(bf16)
    fc1W = params["fc1W"].astype(bf16)
    fc2W = params["fc2W"].astype(bf16)

    # small per-channel vectors packed into a single (20, maxw) f32 bundle
    maxw = max(HID, 2 * C, C + C4)

    def row(v):
        v = jnp.asarray(v, jnp.float32).reshape(1, -1)
        return jnp.pad(v, ((0, 0), (0, maxw - v.shape[1])))

    vecs = jnp.concatenate(
        [row(params["lepeW"][ti]) for ti in range(9)]
        + [row(params["n1g"]), row(params["n1b"]),
           row(params["n2g"]), row(params["n2b"]),
           row(b1), row(params["dnb"]), row(b2), row(params["outb"]),
           row(params["fc1b"]), row(params["fc2b"]), row(params["lepeb"])],
        axis=0)

    # de-interleaved RoPE tables [cos|cos], [-sin|+sin], shipped as bf16 and
    # tiled per token tile (only the tile slab is resident).
    cosD = jnp.concatenate([cos_half, cos_half], axis=-1).astype(bf16)
    sinD = jnp.concatenate([-sin_half, sin_half], axis=-1).astype(bf16)

    # block-diagonal same-head mask (rows: permuted q/k channels, cols: v), bf16
    head_perm = perm // hd
    head_out = np.arange(C) // hd
    mbd = jnp.asarray((head_perm[:, None] == head_out[None, :]).astype(np.float32),
                      dtype=bf16)

    # LePE boundary-validity masks, one column per 3x3 tap, bf16
    rr, cc = np.arange(N) // W, np.arange(N) % W
    lmask_np = np.stack(
        [((rr + dy >= 0) & (rr + dy < H) & (cc + dx >= 0) & (cc + dx < W))
         for dy in (-1, 0, 1) for dx in (-1, 0, 1)], axis=1).astype(np.float32)
    lmask = jnp.asarray(lmask_np, dtype=bf16)

    compiler_p1 = pltpu.CompilerParams(
        dimension_semantics=("parallel", "arbitrary"),
        vmem_limit_bytes=vmem_limit_bytes)
    compiler_p2 = pltpu.CompilerParams(
        dimension_semantics=("parallel", "parallel"),
        vmem_limit_bytes=vmem_limit_bytes)

    cost1 = pl.CostEstimate(
        flops=int(2 * B * N * (C * (C + C4) + C4 * C + C * C)),
        transcendentals=int(B * N * (C + C4)),
        bytes_accessed=int(4 * B * N * C + 2 * B * N * C
                           + 2 * (C * (C + C4) + C4 * C) + 4 * B * C * C))
    cost2 = pl.CostEstimate(
        flops=int(2 * B * N * (2 * C * C + 3 * C * C + 2 * C * HID)),
        transcendentals=int(B * N * (2 * C + HID)),
        bytes_accessed=int(4 * B * N * C * 2 + 2 * B * N * C
                           + 2 * (4 * C * C + 2 * C * HID)))

    # ------------------------------ phase 1 ------------------------------------
    kv, kmean, v = pl.pallas_call(
        functools.partial(_lgvit_p1_kernel, inv_n=1.0 / N),
        out_shape=(jax.ShapeDtypeStruct((B, C, C), bf16),
                   jax.ShapeDtypeStruct((B, 1, C), jnp.float32),
                   jax.ShapeDtypeStruct((B, N, C), bf16)),
        grid=(B, T),
        in_specs=[
            pl.BlockSpec((None, tn, C), lambda b, t: (b, t, 0)),   # x tile
            pl.BlockSpec(w1.shape, lambda b, t: (0, 0)),           # [k|up] weight
            pl.BlockSpec(dnW.shape, lambda b, t: (0, 0)),          # down_proj
            pl.BlockSpec(mbd.shape, lambda b, t: (0, 0)),          # same-head mask
            pl.BlockSpec(vecs.shape, lambda b, t: (0, 0)),         # bias/LN bundle
            pl.BlockSpec((tn, C), lambda b, t: (t, 0)),            # cos tile
            pl.BlockSpec((tn, C), lambda b, t: (t, 0)),            # sin tile
        ],
        out_specs=(
            pl.BlockSpec((None, C, C), lambda b, t: (b, 0, 0)),    # kv (masked/N)
            pl.BlockSpec((None, 1, C), lambda b, t: (b, 0, 0)),    # k_mean
            pl.BlockSpec((None, tn, C), lambda b, t: (b, t, 0)),   # v (bf16)
        ),
        scratch_shapes=[pltpu.VMEM((C, C), jnp.float32),
                        pltpu.VMEM((1, C), jnp.float32)],
        compiler_params=compiler_p1,
        cost_estimate=cost1,
    )(x, w1, dnW, mbd, vecs, cosD, sinD)

    # zero halo rows for LePE (plain XLA pad between the two kernels)
    v_padded = jnp.pad(v, ((0, 0), (PAD, PAD), (0, 0)))

    # ------------------------------ phase 2 ------------------------------------
    out = pl.pallas_call(
        functools.partial(_lgvit_p2_kernel, W=W, pad=PAD, hid_chunk=hk),
        out_shape=jax.ShapeDtypeStruct((B, N, C), jnp.float32),
        grid=(B, T),
        in_specs=[
            pl.BlockSpec((None, tn, C), lambda b, t: (b, t, 0)),   # x tile
            pl.BlockSpec(memory_space=pl.ANY),                     # padded v (HBM)
            pl.BlockSpec((None, C, C), lambda b, t: (b, 0, 0)),    # kv
            pl.BlockSpec((None, 1, C), lambda b, t: (b, 0, 0)),    # k_mean
            pl.BlockSpec(w2.shape, lambda b, t: (0, 0)),           # [act|q] weight
            pl.BlockSpec(outW.shape, lambda b, t: (0, 0)),
            pl.BlockSpec(fc1W.shape, lambda b, t: (0, 0)),
            pl.BlockSpec(fc2W.shape, lambda b, t: (0, 0)),
            pl.BlockSpec(mbd.shape, lambda b, t: (0, 0)),
            pl.BlockSpec(vecs.shape, lambda b, t: (0, 0)),
            pl.BlockSpec((tn, C), lambda b, t: (t, 0)),            # cos tile
            pl.BlockSpec((tn, C), lambda b, t: (t, 0)),            # sin tile
            pl.BlockSpec((tn, 9), lambda b, t: (t, 0)),            # LePE masks
        ],
        out_specs=pl.BlockSpec((None, tn, C), lambda b, t: (b, t, 0)),
        scratch_shapes=[pltpu.VMEM((tn + 2 * PAD, C), bf16),
                        pltpu.SemaphoreType.DMA(())],
        compiler_params=compiler_p2,
        cost_estimate=cost2,
    )(x, v_padded, kv, kmean, w2, outW, fc1W, fc2W, mbd, vecs, cosD, sinD, lmask)

    return out


# --------------------------- plain-JAX reference (check) -----------------------

def ref_forward(x, p, cos_half, sin_half, *, H, W, num_heads):
    with jax.default_matmul_precision("float32"):
        B, N, C = x.shape
        hd = C // num_heads
        shortcut = x
        xn = _layernorm(x, p["n1g"], p["n1b"])
        act_res = jax.nn.silu(xn @ p["actW"] + p["actb"])
        qk = xn @ p["qkW"] + p["qkb"]
        q = jax.nn.elu(qk[..., :C]) + 1.0
        k = jax.nn.elu(qk[..., C:]) + 1.0
        v = jax.nn.silu(xn @ p["upW"] + p["upb"]) @ p["dnW"] + p["dnb"]

        def rope(z):
            zr = z.reshape(B, N, C // 2, 2)
            ze, zo = zr[..., 0], zr[..., 1]
            return jnp.stack([cos_half * ze - sin_half * zo,
                              sin_half * ze + cos_half * zo],
                             axis=-1).reshape(B, N, C)

        qr, kr = rope(q), rope(k)

        def heads(z):
            return z.reshape(B, N, num_heads, hd).transpose(0, 2, 1, 3)

        qh, kh, vh, qrh, krh = map(heads, (q, k, v, qr, kr))
        kmean = kh.mean(axis=2, keepdims=True)
        zz = 1.0 / (jnp.einsum("bhnd,bhmd->bhnm", qh, kmean) + 1e-6)
        kv = jnp.einsum("bhnd,bhne->bhde", krh, vh) / N
        xa = jnp.einsum("bhnd,bhde->bhne", qrh, kv) * zz
        xa = xa.transpose(0, 2, 1, 3).reshape(B, N, C)

        v4 = vh.transpose(0, 2, 1, 3).reshape(B, H, W, C)
        vp = jnp.pad(v4, ((0, 0), (1, 1), (1, 1), (0, 0)))
        lepe = jnp.zeros_like(v4)
        for ky in range(3):
            for kx in range(3):
                lepe = lepe + vp[:, ky:ky + H, kx:kx + W, :] * p["lepeW"][ky * 3 + kx]
        lepe = (lepe + p["lepeb"].reshape(C)).reshape(B, N, C)

        xa = xa + lepe
        x1 = shortcut + (xa * act_res) @ p["outW"] + p["outb"]
        xn2 = _layernorm(x1, p["n2g"], p["n2b"])
        mlp = jax.nn.gelu(xn2 @ p["fc1W"] + p["fc1b"],
                          approximate=False) @ p["fc2W"] + p["fc2b"]
        return x1 + mlp


# -------------------------------------- main ------------------------------------

if __name__ == "__main__":
    B, H, W, C, NUM_HEADS = 2, 8, 8, 32, 4
    N = H * W
    C4 = int(C * 0.25)          # up_proj dim
    HID = int(C * 4.0)          # mlp hidden dim

    key = jax.random.PRNGKey(0)
    keys = jax.random.split(key, 17)

    def nrm(k, shape, scale=0.15):
        return (scale * jax.random.normal(k, shape)).astype(jnp.float32)

    # weights stored as (in, out); torch nn.Linear weight would be the transpose
    params = {
        "n1g": jnp.ones((1, C), jnp.float32),
        "n1b": jnp.zeros((1, C), jnp.float32),
        "actW": nrm(keys[0], (C, C)), "actb": nrm(keys[1], (1, C), 0.05),
        "qkW": nrm(keys[2], (C, 2 * C)), "qkb": nrm(keys[3], (1, 2 * C), 0.05),
        "upW": nrm(keys[4], (C, C4)), "upb": nrm(keys[5], (1, C4), 0.05),
        "dnW": nrm(keys[6], (C4, C)), "dnb": nrm(keys[7], (1, C), 0.05),
        "lepeW": nrm(keys[8], (9, C)),           # tap (ky*3+kx, c) of torch (C,1,3,3)
        "lepeb": nrm(keys[9], (1, C), 0.05),
        "outW": nrm(keys[10], (C, C)), "outb": nrm(keys[11], (1, C), 0.05),
        "n2g": jnp.ones((1, C), jnp.float32),
        "n2b": jnp.zeros((1, C), jnp.float32),
        "fc1W": nrm(keys[12], (C, HID)), "fc1b": nrm(keys[13], (1, HID), 0.05),
        "fc2W": nrm(keys[14], (HID, C)), "fc2b": nrm(keys[15], (1, C), 0.05),
    }

    # RoPE tables (matches RoPE(shape=(H, W, C)) buffer construction)
    k_max = C // 4
    theta = 1.0 / (10000.0 ** (jnp.arange(k_max, dtype=jnp.float32) / k_max))
    gi, gj = jnp.meshgrid(jnp.arange(H, dtype=jnp.float32),
                          jnp.arange(W, dtype=jnp.float32), indexing="ij")
    angles = jnp.concatenate([gi[..., None] * theta, gj[..., None] * theta],
                             axis=-1).reshape(N, C // 2)
    cos_half = jnp.cos(angles)
    sin_half = jnp.sin(angles)

    x = jax.random.normal(keys[16], (B, N, C), jnp.float32)

    # token_tile=32 -> 2 token tiles per image, so the phase-1 accumulation and
    # the phase-2 halo DMA paths are both exercised even at toy shapes.
    out = lgvit_block(x, params, cos_half, sin_half,
                      H=H, W=W, num_heads=NUM_HEADS, token_tile=32)
    out = jax.block_until_ready(out)

    ref = ref_forward(x, params, cos_half, sin_half, H=H, W=W, num_heads=NUM_HEADS)
    err = float(jnp.max(jnp.abs(out - ref)))
    assert bool(jnp.all(jnp.isfinite(out))), "non-finite kernel output"
    assert err < 5e-2, f"mismatch vs reference: max abs err = {err}"
    print("KERNEL_OK")
</pallas_src>

<mosaic_0001>
module attributes {stable_mosaic.version = 11 : i64} {
  func.func @_lgvit_p1_kernel(%arg0: i32, %arg1: i32, %arg2: memref<1x32x32xf32, #tpu.memory_space<vmem>>, %arg3: memref<32x40xbf16, #tpu.memory_space<vmem>>, %arg4: memref<8x32xbf16, #tpu.memory_space<vmem>>, %arg5: memref<32x32xbf16, #tpu.memory_space<vmem>>, %arg6: memref<20x128xf32, #tpu.memory_space<vmem>>, %arg7: memref<32x32xbf16, #tpu.memory_space<vmem>>, %arg8: memref<32x32xbf16, #tpu.memory_space<vmem>>, %arg9: memref<1x32x32xbf16, #tpu.memory_space<vmem>>, %arg10: memref<1x1x32xf32, #tpu.memory_space<vmem>>, %arg11: memref<1x32x32xbf16, #tpu.memory_space<vmem>>, %arg12: memref<32x32xf32, #tpu.memory_space<vmem>>, %arg13: memref<1x32xf32, #tpu.memory_space<vmem>>) attributes {dimension_semantics = [#tpu.dimension_semantics<parallel>, #tpu.dimension_semantics<arbitrary>], iteration_bounds = array<i64: 2, 2>, scalar_prefetch = 0 : i64, scratch_operands = 2 : i64, tpu.core_type = #tpu.core_type<tc>, window_params = [{transform_indices = @transform_0, window_bounds = array<i64: 1, 32, 32>}, {pipeline_mode = #tpu.pipeline_mode<synchronous>, transform_indices = @transform_1, window_bounds = array<i64: 32, 40>}, {pipeline_mode = #tpu.pipeline_mode<synchronous>, transform_indices = @transform_2, window_bounds = array<i64: 8, 32>}, {pipeline_mode = #tpu.pipeline_mode<synchronous>, transform_indices = @transform_3, window_bounds = array<i64: 32, 32>}, {pipeline_mode = #tpu.pipeline_mode<synchronous>, transform_indices = @transform_4, window_bounds = array<i64: 20, 128>}, {transform_indices = @transform_5, window_bounds = array<i64: 32, 32>}, {transform_indices = @transform_6, window_bounds = array<i64: 32, 32>}, {transform_indices = @transform_7, window_bounds = array<i64: 1, 32, 32>}, {transform_indices = @transform_8, window_bounds = array<i64: 1, 1, 32>}, {transform_indices = @transform_9, window_bounds = array<i64: 1, 32, 32>}]} {
    %c0 = arith.constant 0 : index
    %c0_0 = arith.constant 0 : index
    %c0_1 = arith.constant 0 : index
    %0 = vector.load %arg2[%c0, %c0_0, %c0_1] : memref<1x32x32xf32, #tpu.memory_space<vmem>>, vector<1x32x32xf32>
    %1 = vector.shape_cast %0 : vector<1x32x32xf32> to vector<32x32xf32>
    %c9 = arith.constant 9 : index
    %c0_2 = arith.constant 0 : index
    %2 = vector.load %arg6[%c9, %c0_2] : memref<20x128xf32, #tpu.memory_space<vmem>>, vector<1x32xf32>
    %c10 = arith.constant 10 : index
    %c0_3 = arith.constant 0 : index
    %3 = vector.load %arg6[%c10, %c0_3] : memref<20x128xf32, #tpu.memory_space<vmem>>, vector<1x32xf32>
    %c13 = arith.constant 13 : index
    %c0_4 = arith.constant 0 : index
    %4 = vector.load %arg6[%c13, %c0_4] : memref<20x128xf32, #tpu.memory_space<vmem>>, vector<1x40xf32>
    %c14 = arith.constant 14 : index
    %c0_5 = arith.constant 0 : index
    %5 = vector.load %arg6[%c14, %c0_5] : memref<20x128xf32, #tpu.memory_space<vmem>>, vector<1x32xf32>
    %cst = arith.constant dense<0.000000e+00> : vector<32xf32>
    %6 = vector.multi_reduction <add>, %1, %cst [1] : vector<32x32xf32> to vector<32xf32>
    %7 = vector.shape_cast %6 : vector<32xf32> to vector<32x1xf32>
    %cst_6 = arith.constant 3.200000e+01 : f32
    %8 = vector.broadcast %cst_6 : f32 to vector<32x1xf32>
    %9 = arith.divf %7, %8 : vector<32x1xf32>
    %10 = vector.broadcast %9 : vector<32x1xf32> to vector<32x32xf32>
    %11 = arith.subf %1, %10 : vector<32x32xf32>
    %12 = arith.mulf %11, %11 : vector<32x32xf32>
    %cst_7 = arith.constant dense<0.000000e+00> : vector<32xf32>
    %13 = vector.multi_reduction <add>, %12, %cst_7 [1] : vector<32x32xf32> to vector<32xf32>
    %14 = vector.shape_cast %13 : vector<32xf32> to vector<32x1xf32>
    %cst_8 = arith.constant 3.200000e+01 : f32
    %15 = vector.broadcast %cst_8 : f32 to vector<32x1xf32>
    %16 = arith.divf %14, %15 : vector<32x1xf32>
    %17 = vector.broadcast %9 : vector<32x1xf32> to vector<32x32xf32>
    %18 = arith.subf %1, %17 : vector<32x32xf32>
    %cst_9 = arith.constant 9.99999974E-6 : f32
    %19 = vector.broadcast %cst_9 : f32 to vector<32x1xf32>
    %20 = arith.addf %16, %19 : vector<32x1xf32>
    %21 = math.rsqrt %20 : vector<32x1xf32>
    %22 = vector.broadcast %21 : vector<32x1xf32> to vector<32x32xf32>
    %23 = arith.mulf %18, %22 : vector<32x32xf32>
    %24 = vector.broadcast %2 : vector<1x32xf32> to vector<32x32xf32>
    %25 = arith.mulf %23, %24 : vector<32x32xf32>
    %26 = vector.broadcast %3 : vector<1x32xf32> to vector<32x32xf32>
    %27 = arith.addf %25, %26 : vector<32x32xf32>
    %28 = arith.truncf %27 : vector<32x32xf32> to vector<32x32xbf16>
    %c0_10 = arith.constant 0 : index
    %c0_11 = arith.constant 0 : index
    %29 = vector.load %arg3[%c0_10, %c0_11] : memref<32x40xbf16, #tpu.memory_space<vmem>>, vector<32x40xbf16>
    %cst_12 = arith.constant dense<0.000000e+00> : vector<32x40xf32>
    %30 = tpu.matmul %28, %29, %cst_12 {dimension_numbers = #tpu.dot_dimension_numbers<[1], [0], [0], [1], [0, 0, 1, 1], [], []>} : vector<32x32xbf16>, vector<32x40xbf16>, vector<32x40xf32> -> vector<32x40xf32>
    %31 = vector.broadcast %4 : vector<1x40xf32> to vector<32x40xf32>
    %32 = arith.addf %30, %31 : vector<32x40xf32>
    %33 = vector.extract_strided_slice %32 {offsets = [0, 0], sizes = [32, 32], strides = [1, 1]} : vector<32x40xf32> to vector<32x32xf32>
    %cst_13 = arith.constant 0.000000e+00 : f32
    %34 = vector.broadcast %cst_13 : f32 to vector<32x32xf32>
    %35 = arith.cmpf ogt, %33, %34 : vector<32x32xf32>
    %cst_14 = arith.constant 1.000000e+00 : f32
    %36 = vector.broadcast %cst_14 : f32 to vector<32x32xf32>
    %37 = arith.addf %33, %36 : vector<32x32xf32>
    %cst_15 = arith.constant 0.000000e+00 : f32
    %38 = vector.broadcast %cst_15 : f32 to vector<32x32xf32>
    %39 = arith.minimumf %33, %38 : vector<32x32xf32>
    %40 = math.exp %39 : vector<32x32xf32>
    %41 = arith.select %35, %37, %40 : vector<32x32xi1>, vector<32x32xf32>
    %42 = vector.extract_strided_slice %32 {offsets = [0, 32], sizes = [32, 8], strides = [1, 1]} : vector<32x40xf32> to vector<32x8xf32>
    %cst_16 = arith.constant 5.000000e-01 : f32
    %43 = vector.broadcast %cst_16 : f32 to vector<32x8xf32>
    %44 = arith.mulf %43, %42 : vector<32x8xf32>
    %45 = math.tanh %44 : vector<32x8xf32>
    %cst_17 = arith.constant 5.000000e-01 : f32
    %46 = vector.broadcast %cst_17 : f32 to vector<32x8xf32>
    %47 = arith.mulf %46, %45 : vector<32x8xf32>
    %cst_18 = arith.constant 5.000000e-01 : f32
    %48 = vector.broadcast %cst_18 : f32 to vector<32x8xf32>
    %49 = arith.addf %47, %48 : vector<32x8xf32>
    %50 = arith.mulf %42, %49 : vector<32x8xf32>
    %51 = arith.truncf %50 : vector<32x8xf32> to vector<32x8xbf16>
    %c0_19 = arith.constant 0 : index
    %c0_20 = arith.constant 0 : index
    %52 = vector.load %arg4[%c0_19, %c0_20] : memref<8x32xbf16, #tpu.memory_space<vmem>>, vector<8x32xbf16>
    %cst_21 = arith.constant dense<0.000000e+00> : vector<32x32xf32>
    %53 = tpu.matmul %51, %52, %cst_21 {dimension_numbers = #tpu.dot_dimension_numbers<[1], [0], [0], [1], [0, 0, 1, 1], [], []>} : vector<32x8xbf16>, vector<8x32xbf16>, vector<32x32xf32> -> vector<32x32xf32>
    %54 = vector.broadcast %5 : vector<1x32xf32> to vector<32x32xf32>
    %55 = arith.addf %53, %54 : vector<32x32xf32>
    %c0_22 = arith.constant 0 : index
    %c0_23 = arith.constant 0 : index
    %56 = vector.load %arg7[%c0_22, %c0_23] : memref<32x32xbf16, #tpu.memory_space<vmem>>, vector<32x32xbf16>
    %57 = arith.extf %56 : vector<32x32xbf16> to vector<32x32xf32>
    %58 = arith.mulf %41, %57 : vector<32x32xf32>
    %59 = vector.extract_strided_slice %41 {offsets = [0, 16], sizes = [32, 16], strides = [1, 1]} : vector<32x32xf32> to vector<32x16xf32>
    %60 = vector.extract_strided_slice %41 {offsets = [0, 0], sizes = [32, 16], strides = [1, 1]} : vector<32x32xf32> to vector<32x16xf32>
    %61 = tpu.concatenate %59, %60 in 1 : vector<32x16xf32>, vector<32x16xf32> -> vector<32x32xf32>
    %c0_24 = arith.constant 0 : index
    %c0_25 = arith.constant 0 : index
    %62 = vector.load %arg8[%c0_24, %c0_25] : memref<32x32xbf16, #tpu.memory_space<vmem>>, vector<32x32xbf16>
    %63 = arith.extf %62 : vector<32x32xbf16> to vector<32x32xf32>
    %64 = arith.mulf %61, %63 : vector<32x32xf32>
    %65 = arith.addf %58, %64 : vector<32x32xf32>
    %66 = arith.truncf %55 : vector<32x32xf32> to vector<32x32xbf16>
    %c0_26 = arith.constant 0 : index
    %c0_27 = arith.constant 0 : index
    %c0_28 = arith.constant 0 : index
    %67 = vector.load %arg11[%c0_26, %c0_27, %c0_28] : memref<1x32x32xbf16, #tpu.memory_space<vmem>>, vector<1x32x32xbf16>
    %68 = vector.shape_cast %67 : vector<1x32x32xbf16> to vector<32x32xbf16>
    %69 = vector.shape_cast %66 : vector<32x32xbf16> to vector<1x32x32xbf16>
    tpu.vector_store %arg11[%c0_26, %c0_27, %c0_28], %69 {strides = array<i32>} : memref<1x32x32xbf16, #tpu.memory_space<vmem>>, vector<1x32x32xbf16>,
    %c0_i32 = arith.constant 0 : i32
    %70 = arith.cmpi eq, %arg1, %c0_i32 : i32
    %71 = arith.extui %70 : i1 to i32
    %c0_i32_29 = arith.constant 0 : i32
    %72 = arith.cmpi ne, %71, %c0_i32_29 : i32
    scf.if %72 {
      %cst_41 = arith.constant 0.000000e+00 : f32
      %87 = vector.broadcast %cst_41 : f32 to vector<32x32xf32>
      %c0_42 = arith.constant 0 : index
      %c0_43 = arith.constant 0 : index
      %88 = vector.load %arg12[%c0_42, %c0_43] : memref<32x32xf32, #tpu.memory_space<vmem>>, vector<32x32xf32>
      tpu.vector_store %arg12[%c0_42, %c0_43], %87 {strides = array<i32>} : memref<32x32xf32, #tpu.memory_space<vmem>>, vector<32x32xf32>,
      %cst_44 = arith.constant 0.000000e+00 : f32
      %89 = vector.broadcast %cst_44 : f32 to vector<1x32xf32>
      %c0_45 = arith.constant 0 : index
      %c0_46 = arith.constant 0 : index
      %90 = vector.load %arg13[%c0_45, %c0_46] : memref<1x32xf32, #tpu.memory_space<vmem>>, vector<1x32xf32>
      tpu.vector_store %arg13[%c0_45, %c0_46], %89 {strides = array<i32>} : memref<1x32xf32, #tpu.memory_space<vmem>>, vector<1x32xf32>,
    } else {
    }
    %c0_30 = arith.constant 0 : index
    %c0_31 = arith.constant 0 : index
    %73 = vector.load %arg12[%c0_30, %c0_31] : memref<32x32xf32, #tpu.memory_space<vmem>>, vector<32x32xf32>
    %74 = arith.truncf %65 : vector<32x32xf32> to vector<32x32xbf16>
    %75 = arith.truncf %55 : vector<32x32xf32> to vector<32x32xbf16>
    %cst_32 = arith.constant dense<0.000000e+00> : vector<32x32xf32>
    %76 = tpu.matmul %74, %75, %cst_32 {dimension_numbers = #tpu.dot_dimension_numbers<[0], [0], [1], [1], [0, 1, 1, 1], [], []>} : vector<32x32xbf16>, vector<32x32xbf16>, vector<32x32xf32> -> vector<32x32xf32>
    %77 = arith.addf %73, %76 : vector<32x32xf32>
    %c0_33 = arith.constant 0 : index
    %c0_34 = arith.constant 0 : index
    %78 = vector.load %arg12[%c0_33, %c0_34] : memref<32x32xf32, #tpu.memory_space<vmem>>, vector<32x32xf32>
    tpu.vector_store %arg12[%c0_33, %c0_34], %77 {strides = array<i32>} : memref<32x32xf32, #tpu.memory_space<vmem>>, vector<32x32xf32>,
    %c0_35 = arith.constant 0 : index
    %c0_36 = arith.constant 0 : index
    %79 = vector.load %arg13[%c0_35, %c0_36] : memref<1x32xf32, #tpu.memory_space<vmem>>, vector<1x32xf32>
    %cst_37 = arith.constant dense<0.000000e+00> : vector<32xf32>
    %80 = vector.multi_reduction <add>, %41, %cst_37 [0] : vector<32x32xf32> to vector<32xf32>
    %81 = vector.shape_cast %80 : vector<32xf32> to vector<1x32xf32>
    %82 = arith.addf %79, %81 : vector<1x32xf32>
    %c0_38 = arith.constant 0 : index
    %c0_39 = arith.constant 0 : index
    %83 = vector.load %arg13[%c0_38, %c0_39] : memref<1x32xf32, #tpu.memory_space<vmem>>, vector<1x32xf32>
    tpu.vector_store %arg13[%c0_38, %c0_39], %82 {strides = array<i32>} : memref<1x32xf32, #tpu.memory_space<vmem>>, vector<1x32xf32>,
    %c1_i32 = arith.constant 1 : i32
    %84 = arith.cmpi eq, %arg1, %c1_i32 : i32
    %85 = arith.extui %84 : i1 to i32
    %c0_i32_40 = arith.constant 0 : i32
    %86 = arith.cmpi ne, %85, %c0_i32_40 : i32
    scf.if %86 {
      %c0_41 = arith.constant 0 : index
      %c0_42 = arith.constant 0 : index
      %87 = vector.load %arg12[%c0_41, %c0_42] : memref<32x32xf32, #tpu.memory_space<vmem>>, vector<32x32xf32>
      %cst_43 = arith.constant 1.562500e-02 : f32
      %88 = vector.broadcast %cst_43 : f32 to vector<32x32xf32>
      %89 = arith.mulf %87, %88 : vector<32x32xf32>
      %c0_44 = arith.constant 0 : index
      %c0_45 = arith.constant 0 : index
      %90 = vector.load %arg5[%c0_44, %c0_45] : memref<32x32xbf16, #tpu.memory_space<vmem>>, vector<32x32xbf16>
      %91 = arith.extf %90 : vector<32x32xbf16> to vector<32x32xf32>
      %92 = arith.mulf %89, %91 : vector<32x32xf32>
      %93 = arith.truncf %92 : vector<32x32xf32> to vector<32x32xbf16>
      %c0_46 = arith.constant 0 : index
      %c0_47 = arith.constant 0 : index
      %c0_48 = arith.constant 0 : index
      %94 = vector.load %arg9[%c0_46, %c0_47, %c0_48] : memref<1x32x32xbf16, #tpu.memory_space<vmem>>, vector<1x32x32xbf16>
      %95 = vector.shape_cast %94 : vector<1x32x32xbf16> to vector<32x32xbf16>
      %96 = vector.shape_cast %93 : vector<32x32xbf16> to vector<1x32x32xbf16>
      tpu.vector_store %arg9[%c0_46, %c0_47, %c0_48], %96 {strides = array<i32>} : memref<1x32x32xbf16, #tpu.memory_space<vmem>>, vector<1x32x32xbf16>,
      %c0_49 = arith.constant 0 : index
      %c0_50 = arith.constant 0 : index
      %97 = vector.load %arg13[%c0_49, %c0_50] : memref<1x32xf32, #tpu.memory_space<vmem>>, vector<1x32xf32>
      %cst_51 = arith.constant 1.562500e-02 : f32
      %98 = vector.broadcast %cst_51 : f32 to vector<1x32xf32>
      %99 = arith.mulf %97, %98 : vector<1x32xf32>
      %c0_52 = arith.constant 0 : index
      %c0_53 = arith.constant 0 : index
      %c0_54 = arith.constant 0 : index
      %100 = vector.load %arg10[%c0_52, %c0_53, %c0_54] : memref<1x1x32xf32, #tpu.memory_space<vmem>>, vector<1x1x32xf32>
      %101 = vector.shape_cast %100 : vector<1x1x32xf32> to vector<1x32xf32>
      %102 = vector.shape_cast %99 : vector<1x32xf32> to vector<1x1x32xf32>
      tpu.vector_store %arg10[%c0_52, %c0_53, %c0_54], %102 {strides = array<i32>} : memref<1x1x32xf32, #tpu.memory_space<vmem>>, vector<1x1x32xf32>,
    } else {
    }
    return
  }
  func.func @transform_0(%arg0: i32, %arg1: i32) -> (i32, i32, i32) {
    %c0_i32 = arith.constant 0 : i32
    %c0_i32_0 = arith.constant 0 : i32
    return %arg0, %arg1, %c0_i32 : i32, i32, i32
  }
  func.func @transform_1(%arg0: i32, %arg1: i32) -> (i32, i32) {
    %c0_i32 = arith.constant 0 : i32
    %c0_i32_0 = arith.constant 0 : i32
    %c0_i32_1 = arith.constant 0 : i32
    return %c0_i32, %c0_i32_0 : i32, i32
  }
  func.func @transform_2(%arg0: i32, %arg1: i32) -> (i32, i32) {
    %c0_i32 = arith.constant 0 : i32
    %c0_i32_0 = arith.constant 0 : i32
    %c0_i32_1 = arith.constant 0 : i32
    return %c0_i32, %c0_i32_0 : i32, i32
  }
  func.func @transform_3(%arg0: i32, %arg1: i32) -> (i32, i32) {
    %c0_i32 = arith.constant 0 : i32
    %c0_i32_0 = arith.constant 0 : i32
    %c0_i32_1 = arith.constant 0 : i32
    return %c0_i32, %c0_i32_0 : i32, i32
  }
  func.func @transform_4(%arg0: i32, %arg1: i32) -> (i32, i32) {
    %c0_i32 = arith.constant 0 : i32
    %c0_i32_0 = arith.constant 0 : i32
    %c0_i32_1 = arith.constant 0 : i32
    return %c0_i32, %c0_i32_0 : i32, i32
  }
  func.func @transform_5(%arg0: i32, %arg1: i32) -> (i32, i32) {
    %c0_i32 = arith.constant 0 : i32
    %c0_i32_0 = arith.constant 0 : i32
    return %arg1, %c0_i32 : i32, i32
  }
  func.func @transform_6(%arg0: i32, %arg1: i32) -> (i32, i32) {
    %c0_i32 = arith.constant 0 : i32
    %c0_i32_0 = arith.constant 0 : i32
    return %arg1, %c0_i32 : i32, i32
  }
  func.func @transform_7(%arg0: i32, %arg1: i32) -> (i32, i32, i32) {
    %c0_i32 = arith.constant 0 : i32
    %c0_i32_0 = arith.constant 0 : i32
    %c0_i32_1 = arith.constant 0 : i32
    return %arg0, %c0_i32, %c0_i32_0 : i32, i32, i32
  }
  func.func @transform_8(%arg0: i32, %arg1: i32) -> (i32, i32, i32) {
    %c0_i32 = arith.constant 0 : i32
    %c0_i32_0 = arith.constant 0 : i32
    %c0_i32_1 = arith.constant 0 : i32
    return %arg0, %c0_i32, %c0_i32_0 : i32, i32, i32
  }
  func.func @transform_9(%arg0: i32, %arg1: i32) -> (i32, i32, i32) {
    %c0_i32 = arith.constant 0 : i32
    %c0_i32_0 = arith.constant 0 : i32
    return %arg0, %arg1, %c0_i32 : i32, i32, i32
  }
}

</mosaic_0001>

<llo_original>
// kernel: tpu_custom_call.1
$region0: #{tpu_custom_call.1}
  #allocation0 [shape = 'u32[]', space=smem, size = 0x4, offset = 0x4, fixed_abs, tag = 'smem constant byte address 0x4 - core index']
  #allocation1 [shape = 'u32[72,128]{1,0:T(1,128)}', space=vmem, size = 0x9000, scoped, tag = 'internal scratch']
  #allocation2 [shape = 'f32[32,32]{1,0:T(8,128)}', space=vmem, size = 0x4000, scoped, tag = 'scratch operand']
  #allocation3 [shape = 'f32[1,32]{1,0:T(1,128)}', space=vmem, size = 0x200, scoped, tag = 'scratch operand']
  %s0 = inlined_call_operand.vmem [shape: f32[2,64,32], index: 0, kind: input, shape index: {}]
  %s1 = inlined_call_operand.vmem [shape: bf16[32,40], index: 1, kind: input, shape index: {}]
  %s2 = inlined_call_operand.vmem [shape: bf16[8,32], index: 2, kind: input, shape index: {}]
  %s3 = inlined_call_operand.vmem [shape: bf16[32,32], index: 3, kind: input, shape index: {}]
  %s4 = inlined_call_operand.vmem [shape: f32[20,128], index: 4, kind: input, shape index: {}]
  %s5 = inlined_call_operand.vmem [shape: bf16[64,32], index: 5, kind: input, shape index: {}]
  %s6 = inlined_call_operand.vmem [shape: bf16[64,32], index: 6, kind: input, shape index: {}]
  %s7 = inlined_call_operand.hbm [shape: bf16[2,32,32], index: 7, kind: output, shape index: {0}]
  %s8 = inlined_call_operand.hbm [shape: f32[2,1,32], index: 8, kind: output, shape index: {1}]
  %s9 = inlined_call_operand.vmem [shape: bf16[2,64,32], index: 9, kind: output, shape index: {2}]
  %10 = xla_tuple %s7, %s8, %s9
  %s11 = sld [smem:[#allocation0]]
  $region85: #{tpu_custom_call.1} parent=0
    _
  %s13 = ssub.s32 1, %s11
  %s14 = scalar_select 0, %s13, %s11
  $region1: #{tpu_custom_call.1} parent=0
    #allocation4 [shape = 'u8[16384]{0}', space=vmem, size = 0x4000, scoped, tag = 'output window, operand 0']
    #allocation5 [shape = 's32[2]{0}', space=sflag, size = 0x8, scoped, tag = 'scoped memory for tpu_custom_call.1']
    #allocation6 [shape = 'u8[1024]{0}', space=vmem, size = 0x400, scoped, tag = 'output window, operand 1']
    #allocation7 [shape = 's32[2]{0}', space=sflag, size = 0x8, scoped, tag = 'scoped memory for tpu_custom_call.1']
    %15 = vsyncpa [#allocation5], 0
    %s16 = scalar_lea.sflag [#allocation5], 1
    %17 = vsyncpa %s16, 0
    %18 = vsyncpa [#allocation7], 0
    %s19 = scalar_lea.sflag [#allocation7], 1
    %20 = vsyncpa %s19, 0
    loop: start=0, step=1, limit=6
    $region2: #{tpu_custom_call.1} parent=1 // loop_pre_header
      _
    $region3: #{tpu_custom_call.1} parent=1 // loop_header
      %s22 = sphi 0, %s26
      %p23 = scmp.ge.s32.totalorder %s22, 6
      %s29 = sphi 0, %s41
      %s30 = sphi 0, %s37
      %s31 = sphi 0, %s29
      %s32 = sphi 0, %s30
      %s33 = sphi 0, %s31
      %s34 = sphi 0, %s32
      %s46 = sphi 0, %s48
      %s49 = sphi 0, %s46
      %s50 = sphi 0, %s49
      %s66 = sphi 0, %s50
      %s70 = sphi 0, %s70
      %s72 = sphi 0, %s70
      %s73 = sphi 0, %s72
      %s87 = sphi 0, %s73
      %s91 = sphi 0, %s91
      %s93 = sphi 0, %s91
      %s94 = sphi 0, %s93
      %s108 = sphi 0, %s94
      %s112 = sphi 0, %s112
      %s114 = sphi 0, %s112
      %s115 = sphi 0, %s114
      %s129 = sphi 0, %s115
      %s133 = sphi 0, %s133
      %s135 = sphi 0, %s133
      %s136 = sphi 0, %s135
      %s150 = sphi 0, %s136
      %s156 = sphi 0, %s158
      %s159 = sphi 0, %s156
      %s160 = sphi 0, %s159
      %s176 = sphi 0, %s160
      %s182 = sphi 0, %s184
      %s185 = sphi 0, %s182
      %s186 = sphi 0, %s185
      %s202 = sphi 0, %s186
      %s208 = sphi 0, %s210
      %s211 = sphi 0, %s208
      %s212 = sphi 0, %s211
      %s228 = sphi 0, %s212
      %s234 = sphi 0, %s236
      %s237 = sphi 0, %s234
      %s238 = sphi 0, %s237
      %s254 = sphi 0, %s238
      %s262 = sphi 0, %s264
      %s265 = sphi 0, %s262
      %s266 = sphi 0, %s265
      %s282 = sphi 0, %s266
    $region4: #{tpu_custom_call.1} parent=1 // loop_header_branch
      %25 = sbr.rel (%p23) target = $region8
    $region5: #{tpu_custom_call.1} parent=1 // loop_body
      %s27 = ssub.s32 %s22, 1
      %s28 = ssub.s32 %s22, 2
      %s35 = sadd.s32 1, %s30
      %p36 = scmp.ge.s32.totalorder %s35, 2
      %s37 = scalar_select %p36, 0, %s35
      %s38 = sadd.s32 1, %s29
      %s39 = scalar_select %p36, %s38, %s29
      %p40 = scmp.ge.s32.totalorder %s39, 2
      %s41 = scalar_select %p40, 0, %s39
      %s42 = ssub.s32 %s29, %s41
      %s43 = ssub.s32 %s30, %s37
      %s44 = sor.u32 %s42, %s43
      %p45 = scmp.eq.s32.totalorder %s44, 0
      %s47 = sadd.s32 %s46, 1
      %s48 = scalar_select %p45, %s46, %s47
      %p51 = pneg %p45
      %p52 = scmp.eq.s32.totalorder %s22, 3
      %p53 = por %p51, %p52
      %p54 = scmp.ne.s32.totalorder %s46, %s49
      %p55 = scmp.eq.s32.totalorder %s22, 0
      %p56 = por %p54, %p55
      %p57 = scmp.ne.s32.totalorder %s46, %s49
      %p58 = scmp.eq.s32.totalorder %s27, 3
      %p59 = por %p57, %p58
      %p60 = scmp.ne.s32.totalorder %s49, %s50
      %p61 = scmp.eq.s32.totalorder %s27, 0
      %p62 = por %p60, %p61
      %p63 = scmp.ne.s32.totalorder %s49, %s50
      %p64 = scmp.eq.s32.totalorder %s28, 3
      %p65 = por %p63, %p64
      %p67 = scmp.ne.s32.totalorder %s50, %s66
      %p68 = scmp.eq.s32.totalorder %s28, 0
      %p69 = por %p67, %p68
      %s71 = sadd.s32 %s70, 1
      %p74 = scmp.eq.s32.totalorder %s22, 3
      %p75 = scmp.ne.s32.totalorder %s70, %s72
      %p76 = scmp.eq.s32.totalorder %s22, 0
      %p77 = por %p75, %p76
      %p78 = scmp.ne.s32.totalorder %s70, %s72
      %p79 = scmp.eq.s32.totalorder %s27, 3
      %p80 = por %p78, %p79
      %p81 = scmp.ne.s32.totalorder %s72, %s73
      %p82 = scmp.eq.s32.totalorder %s27, 0
      %p83 = por %p81, %p82
      %p84 = scmp.ne.s32.totalorder %s72, %s73
      %p85 = scmp.eq.s32.totalorder %s28, 3
      %p86 = por %p84, %p85
      %p88 = scmp.ne.s32.totalorder %s73, %s87
      %p89 = scmp.eq.s32.totalorder %s28, 0
      %p90 = por %p88, %p89
      %s92 = sadd.s32 %s91, 1
      %p95 = scmp.eq.s32.totalorder %s22, 3
      %p96 = scmp.ne.s32.totalorder %s91, %s93
      %p97 = scmp.eq.s32.totalorder %s22, 0
      %p98 = por %p96, %p97
      %p99 = scmp.ne.s32.totalorder %s91, %s93
      %p100 = scmp.eq.s32.totalorder %s27, 3
      %p101 = por %p99, %p100
      %p102 = scmp.ne.s32.totalorder %s93, %s94
      %p103 = scmp.eq.s32.totalorder %s27, 0
      %p104 = por %p102, %p103
      %p105 = scmp.ne.s32.totalorder %s93, %s94
      %p106 = scmp.eq.s32.totalorder %s28, 3
      %p107 = por %p105, %p106
      %p109 = scmp.ne.s32.totalorder %s94, %s108
      %p110 = scmp.eq.s32.totalorder %s28, 0
      %p111 = por %p109, %p110
      %s113 = sadd.s32 %s112, 1
      %p116 = scmp.eq.s32.totalorder %s22, 3
      %p117 = scmp.ne.s32.totalorder %s112, %s114
      %p118 = scmp.eq.s32.totalorder %s22, 0
      %p119 = por %p117, %p118
      %p120 = scmp.ne.s32.totalorder %s112, %s114
      %p121 = scmp.eq.s32.totalorder %s27, 3
      %p122 = por %p120, %p121
      %p123 = scmp.ne.s32.totalorder %s114, %s115
      %p124 = scmp.eq.s32.totalorder %s27, 0
      %p125 = por %p123, %p124
      %p126 = scmp.ne.s32.totalorder %s114, %s115
      %p127 = scmp.eq.s32.totalorder %s28, 3
      %p128 = por %p126, %p127
      %p130 = scmp.ne.s32.totalorder %s115, %s129
      %p131 = scmp.eq.s32.totalorder %s28, 0
      %p132 = por %p130, %p131
      %s134 = sadd.s32 %s133, 1
      %p137 = scmp.eq.s32.totalorder %s22, 3
      %p138 = scmp.ne.s32.totalorder %s133, %s135
      %p139 = scmp.eq.s32.totalorder %s22, 0
      %p140 = por %p138, %p139
      %p141 = scmp.ne.s32.totalorder %s133, %s135
      %p142 = scmp.eq.s32.totalorder %s27, 3
      %p143 = por %p141, %p142
      %p144 = scmp.ne.s32.totalorder %s135, %s136
      %p145 = scmp.eq.s32.totalorder %s27, 0
      %p146 = por %p144, %p145
      %p147 = scmp.ne.s32.totalorder %s135, %s136
      %p148 = scmp.eq.s32.totalorder %s28, 3
      %p149 = por %p147, %p148
      %p151 = scmp.ne.s32.totalorder %s136, %s150
      %p152 = scmp.eq.s32.totalorder %s28, 0
      %p153 = por %p151, %p152
      %s154 = ssub.s32 %s30, %s37
      %p155 = scmp.eq.s32.totalorder %s154, 0
      %s157 = sadd.s32 %s156, 1
      %s158 = scalar_select %p155, %s156, %s157
      %p161 = pneg %p155
      %p162 = scmp.eq.s32.totalorder %s22, 3
      %p163 = por %p161, %p162
      %p164 = scmp.ne.s32.totalorder %s156, %s159
      %p165 = scmp.eq.s32.totalorder %s22, 0
      %p166 = por %p164, %p165
      %p167 = scmp.ne.s32.totalorder %s156, %s159
      %p168 = scmp.eq.s32.totalorder %s27, 3
      %p169 = por %p167, %p168
      %p170 = scmp.ne.s32.totalorder %s159, %s160
      %p171 = scmp.eq.s32.totalorder %s27, 0
      %p172 = por %p170, %p171
      %p173 = scmp.ne.s32.totalorder %s159, %s160
      %p174 = scmp.eq.s32.totalorder %s28, 3
      %p175 = por %p173, %p174
      %p177 = scmp.ne.s32.totalorder %s160, %s176
      %p178 = scmp.eq.s32.totalorder %s28, 0
      %p179 = por %p177, %p178
      %s180 = ssub.s32 %s30, %s37
      %p181 = scmp.eq.s32.totalorder %s180, 0
      %s183 = sadd.s32 %s182, 1
      %s184 = scalar_select %p181, %s182, %s183
      %p187 = pneg %p181
      %p188 = scmp.eq.s32.totalorder %s22, 3
      %p189 = por %p187, %p188
      %p190 = scmp.ne.s32.totalorder %s182, %s185
      %p191 = scmp.eq.s32.totalorder %s22, 0
      %p192 = por %p190, %p191
      %p193 = scmp.ne.s32.totalorder %s182, %s185
      %p194 = scmp.eq.s32.totalorder %s27, 3
      %p195 = por %p193, %p194
      %p196 = scmp.ne.s32.totalorder %s185, %s186
      %p197 = scmp.eq.s32.totalorder %s27, 0
      %p198 = por %p196, %p197
      %p199 = scmp.ne.s32.totalorder %s185, %s186
      %p200 = scmp.eq.s32.totalorder %s28, 3
      %p201 = por %p199, %p200
      %p203 = scmp.ne.s32.totalorder %s186, %s202
      %p204 = scmp.eq.s32.totalorder %s28, 0
      %p205 = por %p203, %p204
      %s206 = ssub.s32 %s29, %s41
      %p207 = scmp.eq.s32.totalorder %s206, 0
      %s209 = sadd.s32 %s208, 1
      %s210 = scalar_select %p207, %s208, %s209
      %p213 = pneg %p207
      %p214 = scmp.eq.s32.totalorder %s22, 3
      %p215 = por %p213, %p214
      %p216 = scmp.ne.s32.totalorder %s208, %s211
      %p217 = scmp.eq.s32.totalorder %s22, 0
      %p218 = por %p216, %p217
      %p219 = scmp.ne.s32.totalorder %s208, %s211
      %p220 = scmp.eq.s32.totalorder %s27, 3
      %p221 = por %p219, %p220
      %p222 = scmp.ne.s32.totalorder %s211, %s212
      %p223 = scmp.eq.s32.totalorder %s27, 0
      %p224 = por %p222, %p223
      %p225 = scmp.ne.s32.totalorder %s211, %s212
      %p226 = scmp.eq.s32.totalorder %s28, 3
      %p227 = por %p225, %p226
      %p229 = scmp.ne.s32.totalorder %s212, %s228
      %p230 = scmp.eq.s32.totalorder %s28, 0
      %p231 = por %p229, %p230
      %s232 = ssub.s32 %s29, %s41
      %p233 = scmp.eq.s32.totalorder %s232, 0
      %s235 = sadd.s32 %s234, 1
      %s236 = scalar_select %p233, %s234, %s235
      %p239 = pneg %p233
      %p240 = scmp.eq.s32.totalorder %s22, 3
      %p241 = por %p239, %p240
      %p242 = scmp.ne.s32.totalorder %s234, %s237
      %p243 = scmp.eq.s32.totalorder %s22, 0
      %p244 = por %p242, %p243
      %p245 = scmp.ne.s32.totalorder %s234, %s237
      %p246 = scmp.eq.s32.totalorder %s27, 3
      %p247 = por %p245, %p246
      %p248 = scmp.ne.s32.totalorder %s237, %s238
      %p249 = scmp.eq.s32.totalorder %s27, 0
      %p250 = por %p248, %p249
      %p251 = scmp.ne.s32.totalorder %s237, %s238
      %p252 = scmp.eq.s32.totalorder %s28, 3
      %p253 = por %p251, %p252
      %p255 = scmp.ne.s32.totalorder %s238, %s254
      %p256 = scmp.eq.s32.totalorder %s28, 0
      %p257 = por %p255, %p256
      %s258 = ssub.s32 %s29, %s41
      %s259 = ssub.s32 %s30, %s37
      %s260 = sor.u32 %s258, %s259
      %p261 = scmp.eq.s32.totalorder %s260, 0
      %s263 = sadd.s32 %s262, 1
      %s264 = scalar_select %p261, %s262, %s263
      %p267 = pneg %p261
      %p268 = scmp.eq.s32.totalorder %s22, 3
      %p269 = por %p267, %p268
      %p270 = scmp.ne.s32.totalorder %s262, %s265
      %p271 = scmp.eq.s32.totalorder %s22, 0
      %p272 = por %p270, %p271
      %p273 = scmp.ne.s32.totalorder %s262, %s265
      %p274 = scmp.eq.s32.totalorder %s27, 3
      %p275 = por %p273, %p274
      %p276 = scmp.ne.s32.totalorder %s265, %s266
      %p277 = scmp.eq.s32.totalorder %s27, 0
      %p278 = por %p276, %p277
      %p279 = scmp.ne.s32.totalorder %s265, %s266
      %p280 = scmp.eq.s32.totalorder %s28, 3
      %p281 = por %p279, %p280
      %p283 = scmp.ne.s32.totalorder %s266, %s282
      %p284 = scmp.eq.s32.totalorder %s28, 0
      %p285 = por %p283, %p284
      %p286 = scmp.le.s32.totalorder 1, %s22
      %p287 = scmp.lt.s32.totalorder %s22, 5
      %p288 = pnand %p286, %p287
      %p289 = pneg %p288
      // Predicated region
      $region9: #{tpu_custom_call.1} parent=5 // pred_check
        _
      $region10: #{tpu_custom_call.1} parent=5 // pred_check_branch
        %291 = sbr.rel (%p288) target = $region12
      $region11: #{tpu_custom_call.1} parent=5 // pred_region
        %s292 = ssub.s32 %s22, 1
        // Predicated region
        $region13: #{tpu_custom_call.1} parent=11 // pred_check
          %p293 = pneg %p83
        $region14: #{tpu_custom_call.1} parent=11 // pred_check_branch
          %295 = sbr.rel (%p293) target = $region16
        $region15: #{tpu_custom_call.1} parent=11 // pred_region
          _
        $region16: #{tpu_custom_call.1} parent=11 // pred_fallthru
          _
        // Predicated region
        $region17: #{tpu_custom_call.1} parent=11 // pred_check
          %p296 = pneg %p104
        $region18: #{tpu_custom_call.1} parent=11 // pred_check_branch
          %298 = sbr.rel (%p296) target = $region20
        $region19: #{tpu_custom_call.1} parent=11 // pred_region
          _
        $region20: #{tpu_custom_call.1} parent=11 // pred_fallthru
          _
        // Predicated region
        $region21: #{tpu_custom_call.1} parent=11 // pred_check
          %p299 = pneg %p125
        $region22: #{tpu_custom_call.1} parent=11 // pred_check_branch
          %301 = sbr.rel (%p299) target = $region24
        $region23: #{tpu_custom_call.1} parent=11 // pred_region
          _
        $region24: #{tpu_custom_call.1} parent=11 // pred_fallthru
          _
        // Predicated region
        $region25: #{tpu_custom_call.1} parent=11 // pred_check
          %p302 = pneg %p146
        $region26: #{tpu_custom_call.1} parent=11 // pred_check_branch
          %304 = sbr.rel (%p302) target = $region28
        $region27: #{tpu_custom_call.1} parent=11 // pred_region
          _
        $region28: #{tpu_custom_call.1} parent=11 // pred_fallthru
          _
      $region12: #{tpu_custom_call.1} parent=5 // pred_fallthru
        _
      %p305 = scmp.lt.s32.totalorder %s22, 4
      // Predicated region
      $region29: #{tpu_custom_call.1} parent=5 // pred_check
        %p306 = pneg %p305
      $region30: #{tpu_custom_call.1} parent=5 // pred_check_branch
        %308 = sbr.rel (%p306) target = $region32
      $region31: #{tpu_custom_call.1} parent=5 // pred_region
        // Predicated region
        $region33: #{tpu_custom_call.1} parent=31 // pred_check
          %p309 = pneg %p56
        $region34: #{tpu_custom_call.1} parent=31 // pred_check_branch
          %311 = sbr.rel (%p309) target = $region36
        $region35: #{tpu_custom_call.1} parent=31 // pred_region
          %s312 = smul.u32 4, %s30
          %p313 = scmp.lt.s32.totalorder %s29, 1
          %s314 = scalar_select %p313, %s29, 1
          %p315 = scmp.lt.s32.totalorder %s312, 7
          %s316 = scalar_select %p315, %s312, 7
          %s317 = smul.addr %s314, 8
          %s318 = sadd.s32 %s316, %s317
          %s319 = smul.addr %s318, 8
          %s320 = scalar_lea.vmem %s0, %s319
          %s321 = smul.u32 4, %s30
        $region36: #{tpu_custom_call.1} parent=31 // pred_fallthru
          _
        // Predicated region
        $region37: #{tpu_custom_call.1} parent=31 // pred_check
          %p322 = pneg %p166
        $region38: #{tpu_custom_call.1} parent=31 // pred_check_branch
          %324 = sbr.rel (%p322) target = $region40
        $region39: #{tpu_custom_call.1} parent=31 // pred_region
          %s325 = smul.u32 4, %s30
          %p326 = scmp.lt.s32.totalorder %s325, 7
          %s327 = scalar_select %p326, %s325, 7
          %s328 = smul.addr %s327, 4
          %s329 = scalar_lea.vmem %s5, %s328
          %s330 = smul.u32 4, %s30
        $region40: #{tpu_custom_call.1} parent=31 // pred_fallthru
          _
        // Predicated region
        $region41: #{tpu_custom_call.1} parent=31 // pred_check
          %p331 = pneg %p192
        $region42: #{tpu_custom_call.1} parent=31 // pred_check_branch
          %333 = sbr.rel (%p331) target = $region44
        $region43: #{tpu_custom_call.1} parent=31 // pred_region
          %s334 = smul.u32 4, %s30
          %p335 = scmp.lt.s32.totalorder %s334, 7
          %s336 = scalar_select %p335, %s334, 7
          %s337 = smul.addr %s336, 4
          %s338 = scalar_lea.vmem %s6, %s337
          %s339 = smul.u32 4, %s30
        $region44: #{tpu_custom_call.1} parent=31 // pred_fallthru
          _
      $region32: #{tpu_custom_call.1} parent=5 // pred_fallthru
        _
      %p340 = scmp.le.s32.totalorder 1, %s22
      %p341 = scmp.lt.s32.totalorder %s22, 5
      %p342 = pnand %p340, %p341
      %p343 = pneg %p342
      // Predicated region
      $region45: #{tpu_custom_call.1} parent=5 // pred_check
        _
      $region46: #{tpu_custom_call.1} parent=5 // pred_check_branch
        %345 = sbr.rel (%p342) target = $region48
      $region47: #{tpu_custom_call.1} parent=5 // pred_region
        %s346 = ssub.s32 %s22, 1
        %s347 = smul.u32 4, %s32
        %p348 = scmp.lt.s32.totalorder %s31, 1
        %s349 = scalar_select %p348, %s31, 1
        %p350 = scmp.lt.s32.totalorder %s347, 7
        %s351 = scalar_select %p350, %s347, 7
        %s352 = smul.addr %s349, 8
        %s353 = sadd.s32 %s351, %s352
        %s354 = smul.addr %s353, 8
        %s355 = scalar_lea.vmem %s0, %s354
        %p356 = pneg %p62
        %p357 = pneg %p59
        %p358 = pneg %p83
        %p359 = pneg %p80
        %p360 = pneg %p104
        %p361 = pneg %p101
        %p362 = pneg %p125
        %p363 = pneg %p122
        %p364 = pneg %p146
        %p365 = pneg %p143
        %s366 = smul.u32 4, %s32
        %p367 = scmp.lt.s32.totalorder %s366, 7
        %s368 = scalar_select %p367, %s366, 7
        %s369 = smul.addr %s368, 4
        %s370 = scalar_lea.vmem %s5, %s369
        %p371 = pneg %p172
        %p372 = pneg %p169
        %s373 = smul.u32 4, %s32
        %p374 = scmp.lt.s32.totalorder %s373, 7
        %s375 = scalar_select %p374, %s373, 7
        %s376 = smul.addr %s375, 4
        %s377 = scalar_lea.vmem %s6, %s376
        %p378 = pneg %p198
        %p379 = pneg %p195
        %p380 = pneg %p224
        %p381 = pneg %p221
        %s382 = sand.u32 %s211, 1
        %s383 = scalar_lea.sflag [#allocation5], %s382
        %s384 = sand.u32 %s211, 1
        %s385 = smul.addr %s384, 16
        %s386 = scalar_lea.vmem [#allocation4], %s385
        %p387 = pneg %p250
        %p388 = pneg %p247
        %s389 = sand.u32 %s237, 1
        %s390 = scalar_lea.sflag [#allocation7], %s389
        %s391 = sand.u32 %s237, 1
        %s392 = scalar_lea.vmem [#allocation6], %s391
        %p393 = pneg %p278
        %p394 = pneg %p275
        %s395 = smul.u32 4, %s32
        %p396 = scmp.lt.s32.totalorder %s31, 1
        %s397 = scalar_select %p396, %s31, 1
        %p398 = scmp.lt.s32.totalorder %s395, 7
        %s399 = scalar_select %p398, %s395, 7
        %s400 = smul.addr %s397, 8
        %s401 = sadd.s32 %s399, %s400
        %s402 = smul.addr %s401, 4
        %s403 = scalar_lea.vmem %s9, %s402
        %s404 = smul.u32 4, %s32
        %p405 = scmp.lt.s32.totalorder %s31, 1
        %s406 = scalar_select %p405, %s31, 1
        %p407 = scmp.lt.s32.totalorder %s404, 7
        %s408 = scalar_select %p407, %s404, 7
        %s409 = smul.addr %s406, 8
        %s410 = sadd.s32 %s408, %s409
        %s411 = smul.addr %s410, 8
        %s412 = scalar_lea.vmem %s0, %s411
        %s413 = smul.u32 4, %s32
        %s414 = smul.u32 4, %s32
        %p415 = scmp.lt.s32.totalorder %s414, 7
        %s416 = scalar_select %p415, %s414, 7
        %s417 = smul.addr %s416, 4
        %s418 = scalar_lea.vmem %s5, %s417
        %s419 = smul.u32 4, %s32
        %s420 = smul.u32 4, %s32
        %p421 = scmp.lt.s32.totalorder %s420, 7
        %s422 = scalar_select %p421, %s420, 7
        %s423 = smul.addr %s422, 4
        %s424 = scalar_lea.vmem %s6, %s423
        %s425 = smul.u32 4, %s32
        %s426 = smul.u32 4, %s32
        %p427 = scmp.lt.s32.totalorder %s31, 1
        %s428 = scalar_select %p427, %s31, 1
        %p429 = scmp.lt.s32.totalorder %s426, 7
        %s430 = scalar_select %p429, %s426, 7
        %s431 = smul.addr %s428, 8
        %s432 = sadd.s32 %s430, %s431
        %s433 = smul.addr %s432, 4
        %s434 = scalar_lea.vmem %s9, %s433
        %s435 = smul.u32 4, %s32
        %v437 = vld [vmem:[%s412] sm:$0xff]
        %v438 = vld [vmem:[%s412 + $0x8] sm:$0xff]
        %v439 = vld [vmem:[%s412 + $0x10] sm:$0xff]
        %v440 = vld [vmem:[%s412 + $0x18] sm:$0xff]
        %v441 = vld [vmem:[%s4 + $0x9] sm:$0x1]
        %v442 = vld [vmem:[%s4 + $0xa] sm:$0x1]
        %v443 = vld [vmem:[%s4 + $0xd] sm:$0x1]
        %v444 = vld [vmem:[%s4 + $0xe] sm:$0x1]
        %vm445 = vcmask 261120
        %v446 = vsel %vm445, %v437, 0.0
        %447 = vadd.xlane.f32.xlu0 %v446
        %v448 = vpop.xlane.xlu0 %447
        %v449 = vsel %vm445, %v438, 0.0
        %450 = vadd.xlane.f32.xlu0 %v449
        %v451 = vpop.xlane.xlu0 %450
        %v452 = vsel %vm445, %v439, 0.0
        %453 = vadd.xlane.f32.xlu0 %v452
        %v454 = vpop.xlane.xlu0 %453
        %v455 = vsel %vm445, %v440, 0.0
        %456 = vadd.xlane.f32.xlu0 %v455
        %v457 = vpop.xlane.xlu0 %456
        %v458 = vrcp.pop 32.0
        %v459 = vmul.f32 32.0, %v458
        %v460 = vsub.f32 1.0, %v459
        %v461 = vmul.f32 %v458, %v460
        %v462 = vadd.f32 %v458, %v461
        %vm463 = vweird.f32 %v458
        %v464 = vsel %vm463, %v458, %v462
        %v465 = vmul.f32 %v448, %v464
        %v466 = vmul.f32 %v451, %v464
        %v467 = vmul.f32 %v454, %v464
        %v468 = vmul.f32 %v457, %v464
        %v469 = vsub.f32 %v437, %v465
        %v470 = vsub.f32 %v438, %v466
        %v471 = vsub.f32 %v439, %v467
        %v472 = vsub.f32 %v440, %v468
        %v473 = vmul.f32 %v469, %v469
        %v474 = vmul.f32 %v470, %v470
        %v475 = vmul.f32 %v471, %v471
        %v476 = vmul.f32 %v472, %v472
        %v477 = vsel %vm445, %v473, 0.0
        %478 = vadd.xlane.f32.xlu0 %v477
        %v479 = vpop.xlane.xlu0 %478
        %v480 = vsel %vm445, %v474, 0.0
        %481 = vadd.xlane.f32.xlu0 %v480
        %v482 = vpop.xlane.xlu0 %481
        %v483 = vsel %vm445, %v475, 0.0
        %484 = vadd.xlane.f32.xlu0 %v483
        %v485 = vpop.xlane.xlu0 %484
        %v486 = vsel %vm445, %v476, 0.0
        %487 = vadd.xlane.f32.xlu0 %v486
        %v488 = vpop.xlane.xlu0 %487
        %v489 = vmul.f32 %v479, %v464
        %v490 = vmul.f32 %v482, %v464
        %v491 = vmul.f32 %v485, %v464
        %v492 = vmul.f32 %v488, %v464
        %v493 = vadd.f32 %v489, 1e-05
        %v494 = vadd.f32 %v490, 1e-05
        %v495 = vadd.f32 %v491, 1e-05
        %v496 = vadd.f32 %v492, 1e-05
        %v497 = vrsqrt.pop %v493
        %v498 = vmul.f32 %v497, %v493
        %v499 = vmul.f32 %v498, %v497
        %v500 = vmul.f32 0.5, %v499
        %v501 = vsub.f32 1.5, %v500
        %v502 = vmul.f32 %v497, %v501
        %vm503 = vweird.f32 %v493
        %vm504 = vweird.f32 %v497
        %vm505 = vmor %vm503, %vm504
        %v506 = vsel %vm505, %v497, %v502
        %v507 = vrsqrt.pop %v494
        %v508 = vmul.f32 %v507, %v494
        %v509 = vmul.f32 %v508, %v507
        %v510 = vmul.f32 0.5, %v509
        %v511 = vsub.f32 1.5, %v510
        %v512 = vmul.f32 %v507, %v511
        %vm513 = vweird.f32 %v494
        %vm514 = vweird.f32 %v507
        %vm515 = vmor %vm513, %vm514
        %v516 = vsel %vm515, %v507, %v512
        %v517 = vrsqrt.pop %v495
        %v518 = vmul.f32 %v517, %v495
        %v519 = vmul.f32 %v518, %v517
        %v520 = vmul.f32 0.5, %v519
        %v521 = vsub.f32 1.5, %v520
        %v522 = vmul.f32 %v517, %v521
        %vm523 = vweird.f32 %v495
        %vm524 = vweird.f32 %v517
        %vm525 = vmor %vm523, %vm524
        %v526 = vsel %vm525, %v517, %v522
        %v527 = vrsqrt.pop %v496
        %v528 = vmul.f32 %v527, %v496
        %v529 = vmul.f32 %v528, %v527
        %v530 = vmul.f32 0.5, %v529
        %v531 = vsub.f32 1.5, %v530
        %v532 = vmul.f32 %v527, %v531
        %vm533 = vweird.f32 %v496
        %vm534 = vweird.f32 %v527
        %vm535 = vmor %vm533, %vm534
        %v536 = vsel %vm535, %v527, %v532
        %v537 = vmul.f32 %v469, %v506
        %v538 = vmul.f32 %v470, %v516
        %v539 = vmul.f32 %v471, %v526
        %v540 = vmul.f32 %v472, %v536
        %v541 = vperm.slane %v441, 0
        %v542 = vmul.f32 %v537, %v541
        %v543 = vmul.f32 %v538, %v541
        %v544 = vmul.f32 %v539, %v541
        %v545 = vmul.f32 %v540, %v541
        %v546 = vperm.slane %v442, 0
        %v547 = vadd.f32 %v542, %v546
        %v548 = vadd.f32 %v543, %v546
        %v549 = vadd.f32 %v544, %v546
        %v550 = vadd.f32 %v545, %v546
        %v551 = vpack.c.bf16 %v548, %v547
        %v552 = vpack.c.bf16 %v550, %v549
        %v553 = vld [vmem:[%s1] sm:$0xf]
        %v554 = vld [vmem:[%s1 + $0x4] sm:$0xf]
        %v555 = vld [vmem:[%s1 + $0x8] sm:$0xf]
        %v556 = vld [vmem:[%s1 + $0xc] sm:$0xf]
        %v557 = vperm.slane %v443, 0
        %v562 = vunpack.c.l.b16 %v553
        %v563 = vunpack.c.l.b16 %v554
        %v564 = vunpack.c.l.b16 %v555
        %v565 = vunpack.c.l.b16 %v556
        %v566 = vpack.c.b16 %v563, %v562
        %v567 = vpack.c.b16 %v565, %v564
        %v571 = vsel %vm445, %v551, 0
        %v574 = vsel %vm445, %v552, 0
        %576 = vmatpush.bf16.msra.mxu0 0
        %577 = vmatpush.bf16.msra.mxu0 0
        %578 = vmatpush.bf16.msra.mxu0 0
        %579 = vmatpush.bf16.msra.mxu0 0
        %580 = vmatpush.bf16.msra.mxu0 0
        %581 = vmatpush.bf16.msra.mxu0 0
        %582 = vmatpush.bf16.msra.mxu0 %v567
        %583 = vmatpush.bf16.msra.mxu0 %v566
        %584 = vmatmul.bf16.gmra.mxu0 %v571
        %v585 = vpop.f32.mrf.mxu0
        %v586 = vadd.f32 %v557, %v585
        %v587 = vpop.f32.mrf.mxu0
        %v588 = vadd.f32 %v557, %v587
        %589 = vmatmul.bf16.gmra.mxu0 %v574
        %v590 = vpop.f32.mrf.mxu0
        %v591 = vadd.f32 %v557, %v590
        %v592 = vpop.f32.mrf.mxu0
        %v593 = vadd.f32 %v557, %v592
        %594 = vdwg.mxu0
        %vm595 = vcmp.gt.f32.partialorder %v586, 0.0
        %vm596 = vcmp.gt.f32.partialorder %v588, 0.0
        %vm597 = vcmp.gt.f32.partialorder %v591, 0.0
        %vm598 = vcmp.gt.f32.partialorder %v593, 0.0
        %v599 = vadd.f32 %v586, 1.0
        %v600 = vadd.f32 %v588, 1.0
        %v601 = vadd.f32 %v591, 1.0
        %v602 = vadd.f32 %v593, 1.0
        %v603 = vmin.f32 %v586, 0.0
        %v604 = vmin.f32 %v588, 0.0
        %v605 = vmin.f32 %v591, 0.0
        %v606 = vmin.f32 %v593, 0.0
        %v607 = vmul.f32 %v603, 1.442695
        %v608 = vpow.pop %v607
        %v609 = vmul.f32 %v604, 1.442695
        %v610 = vpow.pop %v609
        %v611 = vmul.f32 %v605, 1.442695
        %v612 = vpow.pop %v611
        %v613 = vmul.f32 %v606, 1.442695
        %v614 = vpow.pop %v613
        %v615 = vsel %vm595, %v599, %v608
        %v616 = vsel %vm596, %v600, %v610
        %v617 = vsel %vm597, %v601, %v612
        %v618 = vsel %vm598, %v602, %v614
        %v619 = vmul.f32 %v586, 0.5
        %v620 = vmul.f32 %v588, 0.5
        %v621 = vmul.f32 %v591, 0.5
        %v622 = vmul.f32 %v593, 0.5
        %v623 = vtanh.pop %v619
        %v624 = vtanh.pop %v620
        %v625 = vtanh.pop %v621
        %v626 = vtanh.pop %v622
        %v627 = vmul.f32 %v623, 0.5
        %v628 = vmul.f32 %v624, 0.5
        %v629 = vmul.f32 %v625, 0.5
        %v630 = vmul.f32 %v626, 0.5
        %v631 = vadd.f32 %v627, 0.5
        %v632 = vadd.f32 %v628, 0.5
        %v633 = vadd.f32 %v629, 0.5
        %v634 = vadd.f32 %v630, 0.5
        %v635 = vmul.f32 %v586, %v631
        %v636 = vmul.f32 %v588, %v632
        %v637 = vmul.f32 %v591, %v633
        %v638 = vmul.f32 %v593, %v634
        %v639 = vpack.c.bf16 %v636, %v635
        %v640 = vpack.c.bf16 %v638, %v637
        %v641 = vld [vmem:[%s2] sm:$0xf]
        %v642 = vperm.slane %v444, 0
        %645 = vrot.lane.b32.xlu0 %v639, 96
        %v646 = vpop.permute.xlu0 %645
        %647 = vrot.lane.b32.xlu0 %v640, 96
        %v648 = vpop.permute.xlu0 %647
        %vm649 = vcmask 64512
        %v651 = vsel %vm649, %v646, 0
        %v654 = vsel %vm649, %v648, 0
        %vm656 = vcmask 1043456
        %v658 = vsel %vm656, %v641, 0
        %660 = vmatpush.bf16.msra.mxu0 0
        %661 = vmatpush.bf16.msra.mxu0 0
        %662 = vmatpush.bf16.msra.mxu0 0
        %663 = vmatpush.bf16.msra.mxu0 0
        %664 = vmatpush.bf16.msra.mxu0 0
        %665 = vmatpush.bf16.msra.mxu0 0
        %666 = vmatpush.bf16.msra.mxu0 0
        %667 = vmatpush.bf16.msra.mxu0 %v658
        %668 = vmatmul.bf16.gmra.mxu0 %v651
        %v669 = vpop.f32.mrf.mxu0
        %v670 = vadd.f32 %v642, %v669
        %v671 = vpop.f32.mrf.mxu0
        %v672 = vadd.f32 %v642, %v671
        %673 = vmatmul.bf16.gmra.mxu0 %v654
        %v674 = vpop.f32.mrf.mxu0
        %v675 = vadd.f32 %v642, %v674
        %v676 = vpop.f32.mrf.mxu0
        %v677 = vadd.f32 %v642, %v676
        %678 = vdwg.mxu0
        %v679 = vld [vmem:[%s418] sm:$0xf]
        %v680 = vld [vmem:[%s418 + $0x4] sm:$0xf]
        %v681 = vld [vmem:[%s418 + $0x8] sm:$0xf]
        %v682 = vld [vmem:[%s418 + $0xc] sm:$0xf]
        %v683 = vunpack.c.l.bf16 %v679
        %v684 = vunpack.c.l.bf16 %v680
        %v685 = vunpack.c.l.bf16 %v681
        %v686 = vunpack.c.l.bf16 %v682
        %v687 = vmul.f32 %v615, %v683
        %v688 = vmul.f32 %v616, %v684
        %v689 = vmul.f32 %v617, %v685
        %v690 = vmul.f32 %v618, %v686
        %695 = vrot.lane.b32.xlu0 %v615, 112
        %v696 = vpop.permute.xlu0 %695
        %697 = vrot.lane.b32.xlu0 %v616, 112
        %v698 = vpop.permute.xlu0 %697
        %699 = vrot.lane.b32.xlu0 %v617, 112
        %v700 = vpop.permute.xlu0 %699
        %701 = vrot.lane.b32.xlu0 %v618, 112
        %v702 = vpop.permute.xlu0 %701
        %707 = vrot.lane.b32.xlu0 %v615, 16
        %v708 = vpop.permute.xlu0 %707
        %709 = vrot.lane.b32.xlu0 %v616, 16
        %v710 = vpop.permute.xlu0 %709
        %711 = vrot.lane.b32.xlu0 %v617, 16
        %v712 = vpop.permute.xlu0 %711
        %713 = vrot.lane.b32.xlu0 %v618, 16
        %v714 = vpop.permute.xlu0 %713
        %vm719 = vcmask 130048
        %v720 = vsel %vm719, %v696, %v708
        %v721 = vsel %vm719, %v698, %v710
        %v722 = vsel %vm719, %v700, %v712
        %v723 = vsel %vm719, %v702, %v714
        %v724 = vld [vmem:[%s424] sm:$0xf]
        %v725 = vld [vmem:[%s424 + $0x4] sm:$0xf]
        %v726 = vld [vmem:[%s424 + $0x8] sm:$0xf]
        %v727 = vld [vmem:[%s424 + $0xc] sm:$0xf]
        %v728 = vunpack.c.l.bf16 %v724
        %v729 = vunpack.c.l.bf16 %v725
        %v730 = vunpack.c.l.bf16 %v726
        %v731 = vunpack.c.l.bf16 %v727
        %v732 = vmul.f32 %v720, %v728
        %v733 = vmul.f32 %v721, %v729
        %v734 = vmul.f32 %v722, %v730
        %v735 = vmul.f32 %v723, %v731
        %v736 = vadd.f32 %v687, %v732
        %v737 = vadd.f32 %v688, %v733
        %v738 = vadd.f32 %v689, %v734
        %v739 = vadd.f32 %v690, %v735
        %v740 = vpack.c.bf16 %v670, %v670
        %v741 = vpack.c.bf16 %v672, %v672
        %v742 = vpack.c.bf16 %v675, %v675
        %v743 = vpack.c.bf16 %v677, %v677
        %vm744 = vcmask 257024
        %745 = vst.msk [vmem:[%s434] sm:$0xf] %vm744, %v740
        %746 = vst.msk [vmem:[%s434 + $0x4] sm:$0xf] %vm744, %v741
        %747 = vst.msk [vmem:[%s434 + $0x8] sm:$0xf] %vm744, %v742
        %748 = vst.msk [vmem:[%s434 + $0xc] sm:$0xf] %vm744, %v743
        %p749 = scmp.eq.s32.totalorder %s32, 0
        // Predicated region
        $region49: #{tpu_custom_call.1} parent=47 // pred_check
          %p750 = pneg %p749
        $region50: #{tpu_custom_call.1} parent=47 // pred_check_branch
          %752 = sbr.rel (%p750) target = $region52
        $region51: #{tpu_custom_call.1} parent=47 // pred_region
          %753 = vst.msk [vmem:[#allocation2] sm:$0xff] %vm445, 0.0
          %754 = vst.msk [vmem:[#allocation2 + $0x8] sm:$0xff] %vm445, 0.0
          %755 = vst.msk [vmem:[#allocation2 + $0x10] sm:$0xff] %vm445, 0.0
          %756 = vst.msk [vmem:[#allocation2 + $0x18] sm:$0xff] %vm445, 0.0
          %vm757 = vcmask 253952
          %758 = vst.msk [vmem:[#allocation3] sm:$0x1] %vm757, 0.0
        $region52: #{tpu_custom_call.1} parent=47 // pred_fallthru
          _
        %v759 = vld [vmem:[#allocation2] sm:$0xff]
        %v760 = vld [vmem:[#allocation2 + $0x8] sm:$0xff]
        %v761 = vld [vmem:[#allocation2 + $0x10] sm:$0xff]
        %v762 = vld [vmem:[#allocation2 + $0x18] sm:$0xff]
        %v763 = vpack.c.bf16 %v737, %v736
        %v764 = vpack.c.bf16 %v739, %v738
        %765 = vxpose.xlu0.c.b16.start [1/8] %v763, 128
        %766 = vxpose.xlu0.c.b16.cont [2/8] %v764, 128
        %767 = vxpose.xlu0.c.b16.cont [3/8] 0, 128
        %768 = vxpose.xlu0.c.b16.cont [4/8] 0, 128
        %769 = vxpose.xlu0.c.b16.cont [5/8] 0, 128
        %770 = vxpose.xlu0.c.b16.cont [6/8] 0, 128
        %771 = vxpose.xlu0.c.b16.cont [7/8] 0, 128
        %772 = vxpose.xlu0.c.b16.end [8/8] 0, 128
        %v773 = vpop.trf.xlu0
        %v774 = vpop.trf.xlu0
        %v775 = vpop.trf.xlu0
        %v776 = vpop.trf.xlu0
        %v777 = vpop.trf.xlu0
        %v778 = vpop.trf.xlu0
        %v779 = vpop.trf.xlu0
        %v780 = vpop.trf.xlu0
        %v785 = vunpack.c.l.b16 %v740
        %v786 = vunpack.c.l.b16 %v741
        %v787 = vunpack.c.l.b16 %v742
        %v788 = vunpack.c.l.b16 %v743
        %v789 = vpack.c.b16 %v786, %v785
        %v790 = vpack.c.b16 %v788, %v787
        %v794 = vsel %vm445, %v773, 0
        %v797 = vsel %vm445, %v774, 0
        %799 = vmatpush.bf16.msra.mxu0 0
        %800 = vmatpush.bf16.msra.mxu0 0
        %801 = vmatpush.bf16.msra.mxu0 0
        %802 = vmatpush.bf16.msra.mxu0 0
        %803 = vmatpush.bf16.msra.mxu0 0
        %804 = vmatpush.bf16.msra.mxu0 0
        %805 = vmatpush.bf16.msra.mxu0 %v790
        %806 = vmatpush.bf16.msra.mxu0 %v789
        %807 = vmatmul.bf16.gmra.mxu0 %v794
        %v808 = vpop.f32.mrf.mxu0
        %v809 = vadd.f32 0.0, %v808
        %v810 = vpop.f32.mrf.mxu0
        %v811 = vadd.f32 0.0, %v810
        %812 = vmatmul.bf16.gmra.mxu0 %v797
        %v813 = vpop.f32.mrf.mxu0
        %v814 = vadd.f32 0.0, %v813
        %v815 = vpop.f32.mrf.mxu0
        %v816 = vadd.f32 0.0, %v815
        %817 = vdwg.mxu0
        %v818 = vadd.f32 %v759, %v809
        %v819 = vadd.f32 %v760, %v811
        %v820 = vadd.f32 %v761, %v814
        %v821 = vadd.f32 %v762, %v816
        %822 = vst.msk [vmem:[#allocation2] sm:$0xff] %vm445, %v818
        %823 = vst.msk [vmem:[#allocation2 + $0x8] sm:$0xff] %vm445, %v819
        %824 = vst.msk [vmem:[#allocation2 + $0x10] sm:$0xff] %vm445, %v820
        %825 = vst.msk [vmem:[#allocation2 + $0x18] sm:$0xff] %vm445, %v821
        %v826 = vld [vmem:[#allocation3] sm:$0x1]
        %v827 = vsel %vm445, %v615, 0.0
        %v828 = vsel %vm445, %v616, 0.0
        %v829 = vadd.f32 %v827, %v828
        %v830 = vsel %vm445, %v617, 0.0
        %v831 = vadd.f32 %v829, %v830
        %v832 = vsel %vm445, %v618, 0.0
        %v833 = vadd.f32 %v831, %v832
        %v834 = vrot.slane %v833, 4
        %v835 = vadd.f32 %v833, %v834
        %v836 = vrot.slane %v835, 2
        %v837 = vadd.f32 %v835, %v836
        %v838 = vrot.slane %v837, 1
        %v839 = vadd.f32 %v837, %v838
        %v840 = vadd.f32 %v826, %v839
        %vm841 = vcmask 253952
        %842 = vst.msk [vmem:[#allocation3] sm:$0x1] %vm841, %v840
        %p843 = scmp.eq.s32.totalorder %s32, 1
        // Predicated region
        $region53: #{tpu_custom_call.1} parent=47 // pred_check
          %p844 = pneg %p843
        $region54: #{tpu_custom_call.1} parent=47 // pred_check_branch
          %846 = sbr.rel (%p844) target = $region56
        $region55: #{tpu_custom_call.1} parent=47 // pred_region
          %v847 = vld [vmem:[#allocation2] sm:$0xff]
          %v848 = vld [vmem:[#allocation2 + $0x8] sm:$0xff]
          %v849 = vld [vmem:[#allocation2 + $0x10] sm:$0xff]
          %v850 = vld [vmem:[#allocation2 + $0x18] sm:$0xff]
          %v851 = vmul.f32 %v847, 0.015625
          %v852 = vmul.f32 %v848, 0.015625
          %v853 = vmul.f32 %v849, 0.015625
          %v854 = vmul.f32 %v850, 0.015625
          %v855 = vld [vmem:[%s3] sm:$0xf]
          %v856 = vld [vmem:[%s3 + $0x4] sm:$0xf]
          %v857 = vld [vmem:[%s3 + $0x8] sm:$0xf]
          %v858 = vld [vmem:[%s3 + $0xc] sm:$0xf]
          %v859 = vunpack.c.l.bf16 %v855
          %v860 = vunpack.c.l.bf16 %v856
          %v861 = vunpack.c.l.bf16 %v857
          %v862 = vunpack.c.l.bf16 %v858
          %v863 = vmul.f32 %v851, %v859
          %v864 = vmul.f32 %v852, %v860
          %v865 = vmul.f32 %v853, %v861
          %v866 = vmul.f32 %v854, %v862
          %v867 = vpack.c.bf16 %v863, %v863
          %v868 = vpack.c.bf16 %v864, %v864
          %v869 = vpack.c.bf16 %v865, %v865
          %v870 = vpack.c.bf16 %v866, %v866
          %871 = vst.msk [vmem:[%s386] sm:$0xf] %vm744, %v867
          %872 = vst.msk [vmem:[%s386 + $0x4] sm:$0xf] %vm744, %v868
          %873 = vst.msk [vmem:[%s386 + $0x8] sm:$0xf] %vm744, %v869
          %874 = vst.msk [vmem:[%s386 + $0xc] sm:$0xf] %vm744, %v870
          %v875 = vld [vmem:[#allocation3] sm:$0x1]
          %v876 = vmul.f32 %v875, 0.015625
          %877 = vst.msk [vmem:[%s392] sm:$0x1] %vm841, %v876
        $region56: #{tpu_custom_call.1} parent=47 // pred_fallthru
          _
        %s878 = sand.u32 %s211, 1
        %s879 = scalar_lea.sflag [#allocation5], %s878
        %s880 = sand.u32 %s211, 1
        %s881 = smul.addr %s880, 16
        %s882 = scalar_lea.vmem [#allocation4], %s881
        %s883 = sand.u32 %s237, 1
        %s884 = scalar_lea.sflag [#allocation7], %s883
        %s885 = sand.u32 %s237, 1
        %s886 = scalar_lea.vmem [#allocation6], %s885
        %s887 = smul.u32 4, %s32
        %p888 = scmp.lt.s32.totalorder %s31, 1
        %s889 = scalar_select %p888, %s31, 1
        %p890 = scmp.lt.s32.totalorder %s887, 7
        %s891 = scalar_select %p890, %s887, 7
        %s892 = smul.addr %s889, 8
        %s893 = sadd.s32 %s891, %s892
        %s894 = smul.addr %s893, 4
        %s895 = scalar_lea.vmem %s9, %s894
        // Predicated region
        $region57: #{tpu_custom_call.1} parent=47 // pred_check
          %p896 = pneg %p221
        $region58: #{tpu_custom_call.1} parent=47 // pred_check_branch
          %898 = sbr.rel (%p896) target = $region60
        $region59: #{tpu_custom_call.1} parent=47 // pred_region
          %900 = vsyncadd %s879, 0
          %s901 = smul.addr %s31, 4
          %s902 = smul.addr %s901, 4
          %s903 = scalar_lea.hbm %s7, %s902
          %s904 = sshll.u32 %s882, 4
          %s905 = int_to_ptr.vmem [resolvable:$true] %s904
          %s906 = sshll.u32 %s903, 4
          %s907 = int_to_ptr.hbm [resolvable:$true] %s906
          %912 = dma.vmem_to_hbm [thread:$0]  %s905, 256, %s907, %s879, 64, 64, 4
        $region60: #{tpu_custom_call.1} parent=47 // pred_fallthru
          _
        // Predicated region
        $region61: #{tpu_custom_call.1} parent=47 // pred_check
          %p913 = pneg %p247
        $region62: #{tpu_custom_call.1} parent=47 // pred_check_branch
          %915 = sbr.rel (%p913) target = $region64
        $region63: #{tpu_custom_call.1} parent=47 // pred_region
          %917 = vsyncadd %s884, 0
          %s918 = scalar_lea.hbm %s8, %s31
          %s920 = sshll.u32 %s886, 4
          %s921 = int_to_ptr.vmem [resolvable:$true] %s920
          %s922 = sshll.u32 %s918, 4
          %s923 = int_to_ptr.hbm [resolvable:$true] %s922
          %925 = dma.vmem_to_hbm [thread:$0]  %s921, 16, %s923, %s884
        $region64: #{tpu_custom_call.1} parent=47 // pred_fallthru
          _
        // Predicated region
        $region65: #{tpu_custom_call.1} parent=47 // pred_check
          %p926 = pneg %p275
        $region66: #{tpu_custom_call.1} parent=47 // pred_check_branch
          %928 = sbr.rel (%p926) target = $region68
        $region67: #{tpu_custom_call.1} parent=47 // pred_region
          %s929 = smul.u32 4, %s32
        $region68: #{tpu_custom_call.1} parent=47 // pred_fallthru
          _
      $region48: #{tpu_custom_call.1} parent=5 // pred_fallthru
        _
      %p930 = scmp.le.s32.totalorder 2, %s22
      // Predicated region
      $region69: #{tpu_custom_call.1} parent=5 // pred_check
        %p931 = pneg %p930
      $region70: #{tpu_custom_call.1} parent=5 // pred_check_branch
        %933 = sbr.rel (%p931) target = $region72
      $region71: #{tpu_custom_call.1} parent=5 // pred_region
        %s934 = ssub.s32 %s22, 2
        // Predicated region
        $region73: #{tpu_custom_call.1} parent=71 // pred_check
          %p935 = pneg %p227
        $region74: #{tpu_custom_call.1} parent=71 // pred_check_branch
          %937 = sbr.rel (%p935) target = $region76
        $region75: #{tpu_custom_call.1} parent=71 // pred_region
          %s938 = sand.u32 %s212, 1
          %s939 = scalar_lea.sflag [#allocation5], %s938
          %s940 = sand.u32 %s212, 1
          %s941 = smul.addr %s940, 16
          %s942 = scalar_lea.vmem [#allocation4], %s941
          %944 = dma.done %s939, 256
        $region76: #{tpu_custom_call.1} parent=71 // pred_fallthru
          _
        // Predicated region
        $region77: #{tpu_custom_call.1} parent=71 // pred_check
          %p945 = pneg %p253
        $region78: #{tpu_custom_call.1} parent=71 // pred_check_branch
          %947 = sbr.rel (%p945) target = $region80
        $region79: #{tpu_custom_call.1} parent=71 // pred_region
          %s948 = sand.u32 %s238, 1
          %s949 = scalar_lea.sflag [#allocation7], %s948
          %s950 = sand.u32 %s238, 1
          %s951 = scalar_lea.vmem [#allocation6], %s950
          %953 = dma.done %s949, 16
        $region80: #{tpu_custom_call.1} parent=71 // pred_fallthru
          _
        // Predicated region
        $region81: #{tpu_custom_call.1} parent=71 // pred_check
          %p954 = pneg %p281
        $region82: #{tpu_custom_call.1} parent=71 // pred_check_branch
          %956 = sbr.rel (%p954) target = $region84
        $region83: #{tpu_custom_call.1} parent=71 // pred_region
          %s957 = smul.u32 4, %s34
          %p958 = scmp.lt.s32.totalorder %s33, 1
          %s959 = scalar_select %p958, %s33, 1
          %p960 = scmp.lt.s32.totalorder %s957, 7
          %s961 = scalar_select %p960, %s957, 7
          %s962 = smul.addr %s959, 8
          %s963 = sadd.s32 %s961, %s962
          %s964 = smul.addr %s963, 4
          %s965 = scalar_lea.vmem %s9, %s964
        $region84: #{tpu_custom_call.1} parent=71 // pred_fallthru
          _
      $region72: #{tpu_custom_call.1} parent=5 // pred_fallthru
        _
    $region6: #{tpu_custom_call.1} parent=1 // loop_footer
      %s26 = sadd.s32 1, %s22
    $region7: #{tpu_custom_call.1} parent=1 // loop_footer_branch
      %21 = sbr.rel target = $region3
    $region8: #{tpu_custom_call.1} parent=1 // loop_exit
      _
    %966 = vsyncpa [#allocation5], 1
    %s967 = scalar_lea.sflag [#allocation5], 1
    %968 = vsyncpa %s967, 1
    %969 = vsyncpa [#allocation7], 1
    %s970 = scalar_lea.sflag [#allocation7], 1
    %971 = vsyncpa %s970, 1

</llo_original>
